<compile_context>
chip_gen: v7x
topology: tpu7x:2x2x1
jax: 0.10.0
libtpu: 0.0.40
codegen_flags: <defaults>
</compile_context>

<pallas_src>
import functools
import math

import jax
import jax.numpy as jnp
import numpy as np
from jax import lax
from jax.experimental import pallas as pl
from jax.experimental.pallas import tpu as pltpu


def _round_up(x, m):
    return (x + m - 1) // m * m


@functools.lru_cache(maxsize=None)
def _strided_roll_ok():
    """One-time probe: strided dynamic pltpu.roll is available on this backend and
    follows the jnp.roll convention (slice i along stride_axis rotated toward higher
    indices by shift + i*stride).  Falls back to the shear-based skew otherwise."""
    def kern(x_ref, o_ref):
        s = pl.program_id(0) + 3                       # dynamic, like the real kernel
        o_ref[...] = pltpu.roll(x_ref[...], s, 1, stride=1, stride_axis=0)

    x = jnp.tile(jnp.arange(128, dtype=jnp.float32)[None, :], (8, 1))
    try:
        y = pl.pallas_call(
            kern,
            out_shape=jax.ShapeDtypeStruct((8, 128), jnp.float32),
            grid=(1,),
            in_specs=[pl.BlockSpec((8, 128), lambda i: (0, 0))],
            out_specs=pl.BlockSpec((8, 128), lambda i: (0, 0)),
        )(x)
        want = jnp.stack([jnp.roll(x[i], 3 + i) for i in range(8)])
        return bool(jnp.allclose(y, want))
    except Exception:
        return False


def _mhra_kernel(x_q_ref, kv_ref, wq_ref, rel_ref, wp_ref, bias_ref,
                 o_ref, cat_ref, *, n_head, head_size, mask, skew, col0, shift_off):
    """One (batch, query-tile) program of multi-head relative attention."""
    tq, E = x_q_ref.shape                 # query tile
    L = kv_ref.shape[0]                   # full key/value sequence length
    d = head_size
    f32, bf16 = jnp.float32, jnp.bfloat16
    q0 = pl.program_id(1) * tq            # first global query row of this tile

    # fused Q projection (all heads): one (tq, E) @ (E, E) MXU matmul; bf16 result.
    q_all = lax.dot_general(x_q_ref[...], wq_ref[...], (((1,), (0,)), ((), ())),
                            preferred_element_type=f32).astype(bf16)

    if mask:
        row_g = q0 + lax.broadcasted_iota(jnp.int32, (tq, L), 0)
        col = lax.broadcasted_iota(jnp.int32, (tq, L), 1)
        keep = col <= row_g                                   # causal mask

    for h in range(n_head):               # heads: small static loop
        lo, hi = h * d, (h + 1) * d
        qh = q_all[:, lo:hi]                                  # (tq, d) bf16
        kh = kv_ref[:, lo:hi]                                 # (L, d) bf16, 1/sqrt(d) pre-folded
        vh = kv_ref[:, E + lo:E + hi]                         # (L, d) bf16

        # content scores on the MXU
        scores = lax.dot_general(qh, kh, (((1,), (1,)), ((), ())),
                                 preferred_element_type=f32)  # (tq, L)

        # relative scores M = q @ rel^T on the MXU ...
        m_rel = lax.dot_general(qh, rel_ref[h], (((1,), (1,)), ((), ())),
                                preferred_element_type=f32)   # (tq, Wr)

        # ... then the skew.
        if skew == "roll":
            # Per-row right rotate by (q0 + a + shift_off) on the XLU (co-issues with
            # MXU), then a static window of L columns.  With the mask=True table any
            # wrap-around only reaches causally masked columns; with the mask=False
            # table the rotate never wraps.
            rolled = pltpu.roll(m_rel, q0 + shift_off, 1, stride=1, stride_axis=0)
            s_rel = rolled[:, col0:col0 + L]
        else:
            # Fallback: greedy binary shear (log2(L) steps of slice/compare/select).
            n_bits = (L - 1).bit_length()
            assert m_rel.shape[1] == L + (1 << n_bits) - 1
            rem = (L - 1 - q0) - lax.broadcasted_iota(jnp.int32, (tq, 1), 0)
            x_sk = m_rel
            w_cur = m_rel.shape[1]
            for b in reversed(range(n_bits)):
                step = 1 << b
                take = rem >= step                            # (tq, 1) bool
                rem = jnp.where(take, rem - step, rem)
                x_sk = jnp.where(take, x_sk[:, step:w_cur], x_sk[:, :w_cur - step])
                w_cur -= step
            s_rel = x_sk                                      # (tq, L)
        scores = scores + s_rel

        if mask:
            scores = jnp.where(keep, scores, -1e30)           # finite "-inf"

        # numerically stable softmax in f32; denominator reciprocal on the EUP slot.
        mx = jnp.max(scores, axis=-1, keepdims=True)
        e = jnp.exp(scores - mx)
        w = e * pl.reciprocal(jnp.sum(e, axis=-1, keepdims=True), approx=True)

        out_h = lax.dot_general(w.astype(bf16), vh, (((1,), (0,)), ((), ())),
                                preferred_element_type=f32)   # (tq, d)
        cat_ref[:, lo:hi] = out_h.astype(bf16)                # concat(heads) scratch

    # fused output projection: one (tq, E) @ (E, E) MXU matmul (contraction K = E).
    out = lax.dot_general(cat_ref[...], wp_ref[...], (((1,), (0,)), ((), ())),
                          preferred_element_type=f32)
    o_ref[...] = (out + bias_ref[...]).astype(o_ref.dtype)


def multi_head_relative_attention(x, params, *, n_head, max_len, mask=True,
                                  q_block=None, skew="auto"):
    """x: (B, L, E).  params = (wq, wk, wv, rel_w, wp, bias) with
    wq/wk/wv: (H, E, d), rel_w: (H, 2*max_len-1, d), wp: (H, d, E), bias: (E,)."""
    B, L, E = x.shape
    if E % n_head != 0:
        raise ValueError("n_embd must be divisible by n_head")
    if L > max_len:
        raise ValueError("sequence length exceeds max_len of the relative table")
    d = E // n_head
    wq, wk, wv, rel_w, wp, bias = params
    bf16, f32 = jnp.bfloat16, jnp.float32

    if skew == "auto":
        skew = "roll" if _strided_roll_ok() else "shear"

    # --- head-fused weights; 1/sqrt(d) folded into Wk (constant-folds under jit) ---
    wq_cat = jnp.transpose(wq, (1, 0, 2)).reshape(E, E).astype(bf16)
    wk_cat = jnp.transpose(wk, (1, 0, 2)).reshape(E, E) * (1.0 / math.sqrt(d))
    wv_cat = jnp.transpose(wv, (1, 0, 2)).reshape(E, E)
    wkv_cat = jnp.concatenate([wk_cat, wv_cat], axis=1).astype(bf16)
    wp_cat = wp.reshape(E, E).astype(bf16)
    bias2 = bias.reshape(1, E).astype(f32)

    # --- K/V projection hoisted out of the per-query-tile program: once per batch ---
    x_bf = x.astype(bf16)
    kv = lax.dot_general(x_bf, wkv_cat, (((2,), (0,)), ((), ())),
                         preferred_element_type=f32).astype(bf16)     # (B, L, 2E)

    # --- relative-position table, laid out for the in-kernel skew ---
    if skew == "roll":
        if mask:
            # Only the L causally reachable distances -(L-1)..0 (halves the rel
            # matmul); left zero-pad to a lane-multiple width so the per-row rotate
            # places them correctly and wrap-around only reaches masked columns.
            idx = jnp.arange(max_len - L, max_len)
            wr = _round_up(L + 1, 128)
            rel_tab = jnp.pad(rel_w[:, idx, :], ((0, 0), (wr - L, 0), (0, 0)))
            shift_off, col0 = 1, 0
        else:
            # Full table of distances -(L-1)..L-1 with one zero column on the left;
            # the rotate never wraps, window is [L, 2L) (lane-aligned when L%128==0).
            idx = jnp.arange(max_len - L, max_len + L - 1)
            wr = _round_up(2 * L, 128)
            rel_tab = jnp.pad(rel_w[:, idx, :], ((0, 0), (1, wr - 2 * L), (0, 0)))
            shift_off, col0 = 0, L
    else:
        # Shear fallback: full table, right-padded so the binary shear ends at width L.
        idx = jnp.arange(max_len - L, max_len + L - 1)
        n_bits = (L - 1).bit_length()
        wr = L + (1 << n_bits) - 1
        rel_tab = jnp.pad(rel_w[:, idx, :], ((0, 0), (0, wr - (2 * L - 1)), (0, 0)))
        shift_off, col0 = 0, 0
    rel_tab = rel_tab.astype(bf16)

    # --- query tiling: bounds VMEM independent of L, capped at 256 (v7x/v5e) ---
    if q_block is None:
        q_block = next((t for t in (256, 128, 64, 32, 16, 8) if L % t == 0), L)
    if L % q_block != 0:
        raise ValueError("q_block must divide L")
    nq = L // q_block

    # --- explicit VMEM budget: streaming operands double-buffered, constants single-
    # buffered, plus f32 temporaries; generous headroom, capped at 128 MiB ---
    est = (2 * q_block * E * 2            # x query tile (bf16, x2 buffers)
           + 2 * L * 2 * E * 2            # kv block (bf16, x2 buffers)
           + E * E * 2                    # Wq (single buffered)
           + n_head * wr * d * 2          # rel table (single buffered)
           + E * E * 2 + E * 4            # Wproj + bias
           + 2 * q_block * E * x.dtype.itemsize   # output tile (x2 buffers)
           + q_block * E * 2              # concat scratch
           + 6 * q_block * max(L, wr) * 4)        # f32 temporaries (scores/m_rel/...)
    vmem_limit = int(min(max(2 * est, 64 * 2**20), 128 * 2**20))

    kernel = functools.partial(_mhra_kernel, n_head=n_head, head_size=d, mask=mask,
                               skew=skew, col0=col0, shift_off=shift_off)
    return pl.pallas_call(
        kernel,
        out_shape=jax.ShapeDtypeStruct((B, L, E), x.dtype),
        grid=(B, nq),
        in_specs=[
            pl.BlockSpec((None, q_block, E), lambda b, qi: (b, qi, 0)),     # x -> Q rows
            pl.BlockSpec((None, L, 2 * E), lambda b, qi: (b, 0, 0)),        # K|V (precomputed)
            pl.BlockSpec((E, E), lambda b, qi: (0, 0),
                         pipeline_mode=pl.Buffered(1)),                     # Wq
            pl.BlockSpec((n_head, wr, d), lambda b, qi: (0, 0, 0),
                         pipeline_mode=pl.Buffered(1)),                     # rel table
            pl.BlockSpec((E, E), lambda b, qi: (0, 0),
                         pipeline_mode=pl.Buffered(1)),                     # Wproj
            pl.BlockSpec((1, E), lambda b, qi: (0, 0),
                         pipeline_mode=pl.Buffered(1)),                     # proj bias
        ],
        out_specs=pl.BlockSpec((None, q_block, E), lambda b, qi: (b, qi, 0)),
        scratch_shapes=[pltpu.VMEM((q_block, E), jnp.bfloat16)],            # concat(heads)
        compiler_params=pltpu.CompilerParams(
            dimension_semantics=("parallel", "parallel"),
            vmem_limit_bytes=vmem_limit),
    )(x_bf, kv, wq_cat, rel_tab, wp_cat, bias2)


def reference(x, params, *, n_head, max_len, mask=True):
    """Pure-JAX f32 (HIGHEST precision) port of the PyTorch forward (dropout = id)."""
    HIGH = jax.lax.Precision.HIGHEST
    B, L, E = x.shape
    d = E // n_head
    wq, wk, wv, rel_w, wp, bias = params
    outs = []
    for h in range(n_head):
        q = jnp.einsum('ble,ed->bld', x, wq[h], precision=HIGH)
        k = jnp.einsum('ble,ed->bld', x, wk[h], precision=HIGH)
        v = jnp.einsum('ble,ed->bld', x, wv[h], precision=HIGH)
        scores = jnp.einsum('bid,bjd->bij', q, k, precision=HIGH) / math.sqrt(d)
        rel_idx = jnp.arange(-L + 1, L) + (max_len - 1)
        e_sel = rel_w[h][rel_idx]                                  # (2L-1, d)
        M = jnp.einsum('bid,rd->bir', q, e_sel, precision=HIGH)    # (B, L, 2L-1)
        Mp = jnp.pad(M, ((0, 0), (0, 0), (1, 0)))                  # skewing trick
        Mr = Mp.reshape(B, 2 * L, L)[:, 1:, :]
        S_rel = Mr.reshape(B, L, 2 * L - 1)[:, :, :L]
        scores = scores + S_rel
        if mask:
            cm = jnp.tril(jnp.ones((L, L)))
            scores = jnp.where(cm == 0, -jnp.inf, scores)
        w = jax.nn.softmax(scores, axis=-1)
        outs.append(jnp.einsum('bij,bjd->bid', w, v, precision=HIGH))
    cat = jnp.concatenate(outs, axis=-1)
    return jnp.einsum('blk,ke->ble', cat, wp.reshape(E, E), precision=HIGH) + bias


def _run_case(*, B, L, E, H, max_len, mask, q_block=None):
    d = E // H
    key = jax.random.PRNGKey(0)
    ks = jax.random.split(key, 7)
    wq = jax.random.normal(ks[0], (H, E, d), jnp.float32) / math.sqrt(E)
    wk = jax.random.normal(ks[1], (H, E, d), jnp.float32) / math.sqrt(E)
    wv = jax.random.normal(ks[2], (H, E, d), jnp.float32) / math.sqrt(E)
    # scale 0.5 so the relative term meaningfully affects the output
    rel_w = jax.random.normal(ks[3], (H, 2 * max_len - 1, d), jnp.float32) * 0.5
    wp = jax.random.normal(ks[4], (H, d, E), jnp.float32) / math.sqrt(E)
    bias = jax.random.normal(ks[5], (E,), jnp.float32) * 0.01
    x = jax.random.normal(ks[6], (B, L, E), jnp.float32)
    params = (wq, wk, wv, rel_w, wp, bias)

    fn = jax.jit(functools.partial(multi_head_relative_attention,
                                   n_head=H, max_len=max_len, mask=mask,
                                   q_block=q_block))
    out = jax.block_until_ready(fn(x, params))
    ref = jax.block_until_ready(
        reference(x, params, n_head=H, max_len=max_len, mask=mask))
    # tolerance sized for bf16 matmul operands (f32 accumulation) vs f32 reference
    np.testing.assert_allclose(np.asarray(out), np.asarray(ref), rtol=8e-2, atol=8e-2)


if __name__ == "__main__":
    # module-default configuration: causal mask
    _run_case(B=2, L=8, E=32, H=4, max_len=16, mask=True)
    # unmasked variant
    _run_case(B=2, L=8, E=32, H=4, max_len=16, mask=False)
    # exercise the query-tile grid axis (two query tiles per batch element)
    _run_case(B=2, L=16, E=32, H=4, max_len=16, mask=True, q_block=8)
    print("KERNEL_OK")
</pallas_src>

<mosaic_0001>
module attributes {stable_mosaic.version = 11 : i64} {
  func.func @_mhra_kernel(%arg0: i32, %arg1: i32, %arg2: memref<1x8x32xbf16, #tpu.memory_space<vmem>>, %arg3: memref<1x8x64xbf16, #tpu.memory_space<vmem>>, %arg4: memref<32x32xbf16, #tpu.memory_space<vmem>>, %arg5: memref<4x15x8xbf16, #tpu.memory_space<vmem>>, %arg6: memref<32x32xbf16, #tpu.memory_space<vmem>>, %arg7: memref<1x32xf32, #tpu.memory_space<vmem>>, %arg8: memref<1x8x32xf32, #tpu.memory_space<vmem>>, %arg9: memref<8x32xbf16, #tpu.memory_space<vmem>>) attributes {dimension_semantics = [#tpu.dimension_semantics<parallel>, #tpu.dimension_semantics<parallel>], iteration_bounds = array<i64: 2, 1>, scalar_prefetch = 0 : i64, scratch_operands = 1 : i64, tpu.core_type = #tpu.core_type<tc>, window_params = [{transform_indices = @transform_0, window_bounds = array<i64: 1, 8, 32>}, {transform_indices = @transform_1, window_bounds = array<i64: 1, 8, 64>}, {pipeline_mode = #tpu.pipeline_mode<synchronous>, transform_indices = @transform_2, window_bounds = array<i64: 32, 32>}, {pipeline_mode = #tpu.pipeline_mode<synchronous>, transform_indices = @transform_3, window_bounds = array<i64: 4, 15, 8>}, {pipeline_mode = #tpu.pipeline_mode<synchronous>, transform_indices = @transform_4, window_bounds = array<i64: 32, 32>}, {pipeline_mode = #tpu.pipeline_mode<synchronous>, transform_indices = @transform_5, window_bounds = array<i64: 1, 32>}, {transform_indices = @transform_6, window_bounds = array<i64: 1, 8, 32>}]} {
    %c8_i32 = arith.constant 8 : i32
    %0 = arith.muli %arg1, %c8_i32 : i32
    %c0 = arith.constant 0 : index
    %c0_0 = arith.constant 0 : index
    %c0_1 = arith.constant 0 : index
    %1 = vector.load %arg2[%c0, %c0_0, %c0_1] : memref<1x8x32xbf16, #tpu.memory_space<vmem>>, vector<1x8x32xbf16>
    %2 = vector.shape_cast %1 : vector<1x8x32xbf16> to vector<8x32xbf16>
    %c0_2 = arith.constant 0 : index
    %c0_3 = arith.constant 0 : index
    %3 = vector.load %arg4[%c0_2, %c0_3] : memref<32x32xbf16, #tpu.memory_space<vmem>>, vector<32x32xbf16>
    %cst = arith.constant dense<0.000000e+00> : vector<8x32xf32>
    %4 = tpu.matmul %2, %3, %cst {dimension_numbers = #tpu.dot_dimension_numbers<[1], [0], [0], [1], [0, 0, 1, 1], [], []>} : vector<8x32xbf16>, vector<32x32xbf16>, vector<8x32xf32> -> vector<8x32xf32>
    %5 = arith.truncf %4 : vector<8x32xf32> to vector<8x32xbf16>
    %6 = tpu.iota {dimensions = array<i32: 0>} : vector<8x8xi32>
    %7 = vector.broadcast %0 : i32 to vector<8x8xi32>
    %8 = arith.addi %7, %6 : vector<8x8xi32>
    %9 = tpu.iota {dimensions = array<i32: 1>} : vector<8x8xi32>
    %10 = arith.cmpi sle, %9, %8 : vector<8x8xi32>
    %11 = vector.extract_strided_slice %5 {offsets = [0, 0], sizes = [8, 8], strides = [1, 1]} : vector<8x32xbf16> to vector<8x8xbf16>
    %c0_4 = arith.constant 0 : index
    %c0_5 = arith.constant 0 : index
    %c0_6 = arith.constant 0 : index
    %12 = vector.load %arg3[%c0_4, %c0_5, %c0_6] : memref<1x8x64xbf16, #tpu.memory_space<vmem>>, vector<1x8x8xbf16>
    %13 = vector.shape_cast %12 : vector<1x8x8xbf16> to vector<8x8xbf16>
    %c0_7 = arith.constant 0 : index
    %c0_8 = arith.constant 0 : index
    %c32 = arith.constant 32 : index
    %14 = vector.load %arg3[%c0_7, %c0_8, %c32] : memref<1x8x64xbf16, #tpu.memory_space<vmem>>, vector<1x8x8xbf16>
    %15 = vector.shape_cast %14 : vector<1x8x8xbf16> to vector<8x8xbf16>
    %cst_9 = arith.constant dense<0.000000e+00> : vector<8x8xf32>
    %16 = tpu.matmul %11, %13, %cst_9 {dimension_numbers = #tpu.dot_dimension_numbers<[1], [1], [0], [0], [0, 0, 1, 0], [], []>} : vector<8x8xbf16>, vector<8x8xbf16>, vector<8x8xf32> -> vector<8x8xf32>
    %c0_10 = arith.constant 0 : index
    %c0_11 = arith.constant 0 : index
    %c0_12 = arith.constant 0 : index
    %17 = vector.load %arg5[%c0_10, %c0_11, %c0_12] : memref<4x15x8xbf16, #tpu.memory_space<vmem>>, vector<1x15x8xbf16>
    %18 = vector.shape_cast %17 : vector<1x15x8xbf16> to vector<15x8xbf16>
    %cst_13 = arith.constant dense<0.000000e+00> : vector<8x15xf32>
    %19 = tpu.matmul %11, %18, %cst_13 {dimension_numbers = #tpu.dot_dimension_numbers<[1], [1], [0], [0], [0, 0, 1, 0], [], []>} : vector<8x8xbf16>, vector<15x8xbf16>, vector<8x15xf32> -> vector<8x15xf32>
    %c7_i32 = arith.constant 7 : i32
    %20 = arith.subi %c7_i32, %0 : i32
    %21 = tpu.iota {dimensions = array<i32: 0>} : vector<8x1xi32>
    %22 = vector.broadcast %20 : i32 to vector<8x1xi32>
    %23 = arith.subi %22, %21 : vector<8x1xi32>
    %c4_i32 = arith.constant 4 : i32
    %24 = vector.broadcast %c4_i32 : i32 to vector<8x1xi32>
    %25 = arith.cmpi sge, %23, %24 : vector<8x1xi32>
    %c4_i32_14 = arith.constant 4 : i32
    %26 = vector.broadcast %c4_i32_14 : i32 to vector<8x1xi32>
    %27 = arith.subi %23, %26 : vector<8x1xi32>
    %28 = arith.select %25, %27, %23 : vector<8x1xi1>, vector<8x1xi32>
    %29 = vector.extract_strided_slice %19 {offsets = [0, 4], sizes = [8, 11], strides = [1, 1]} : vector<8x15xf32> to vector<8x11xf32>
    %30 = vector.extract_strided_slice %19 {offsets = [0, 0], sizes = [8, 11], strides = [1, 1]} : vector<8x15xf32> to vector<8x11xf32>
    %31 = vector.shape_cast %25 : vector<8x1xi1> to vector<8x1xi1>
    %32 = vector.broadcast %31 : vector<8x1xi1> to vector<8x11xi1>
    %33 = arith.select %32, %29, %30 : vector<8x11xi1>, vector<8x11xf32>
    %c2_i32 = arith.constant 2 : i32
    %34 = vector.broadcast %c2_i32 : i32 to vector<8x1xi32>
    %35 = arith.cmpi sge, %28, %34 : vector<8x1xi32>
    %c2_i32_15 = arith.constant 2 : i32
    %36 = vector.broadcast %c2_i32_15 : i32 to vector<8x1xi32>
    %37 = arith.subi %28, %36 : vector<8x1xi32>
    %38 = arith.select %35, %37, %28 : vector<8x1xi1>, vector<8x1xi32>
    %39 = vector.extract_strided_slice %33 {offsets = [0, 2], sizes = [8, 9], strides = [1, 1]} : vector<8x11xf32> to vector<8x9xf32>
    %40 = vector.extract_strided_slice %33 {offsets = [0, 0], sizes = [8, 9], strides = [1, 1]} : vector<8x11xf32> to vector<8x9xf32>
    %41 = vector.shape_cast %35 : vector<8x1xi1> to vector<8x1xi1>
    %42 = vector.broadcast %41 : vector<8x1xi1> to vector<8x9xi1>
    %43 = arith.select %42, %39, %40 : vector<8x9xi1>, vector<8x9xf32>
    %c1_i32 = arith.constant 1 : i32
    %44 = vector.broadcast %c1_i32 : i32 to vector<8x1xi32>
    %45 = arith.cmpi sge, %38, %44 : vector<8x1xi32>
    %46 = vector.extract_strided_slice %43 {offsets = [0, 1], sizes = [8, 8], strides = [1, 1]} : vector<8x9xf32> to vector<8x8xf32>
    %47 = vector.extract_strided_slice %43 {offsets = [0, 0], sizes = [8, 8], strides = [1, 1]} : vector<8x9xf32> to vector<8x8xf32>
    %48 = vector.shape_cast %45 : vector<8x1xi1> to vector<8x1xi1>
    %49 = vector.broadcast %48 : vector<8x1xi1> to vector<8x8xi1>
    %50 = arith.select %49, %46, %47 : vector<8x8xi1>, vector<8x8xf32>
    %51 = arith.addf %16, %50 : vector<8x8xf32>
    %cst_16 = arith.constant -1.000000e+30 : f32
    %52 = vector.broadcast %cst_16 : f32 to vector<8x8xf32>
    %53 = arith.select %10, %51, %52 : vector<8x8xi1>, vector<8x8xf32>
    %cst_17 = arith.constant dense<0xFF800000> : vector<8xf32>
    %54 = vector.multi_reduction <maximumf>, %53, %cst_17 [1] : vector<8x8xf32> to vector<8xf32>
    %55 = vector.shape_cast %54 : vector<8xf32> to vector<8x1xf32>
    %56 = vector.broadcast %55 : vector<8x1xf32> to vector<8x8xf32>
    %57 = arith.subf %53, %56 : vector<8x8xf32>
    %58 = math.exp %57 : vector<8x8xf32>
    %cst_18 = arith.constant dense<0.000000e+00> : vector<8xf32>
    %59 = vector.multi_reduction <add>, %58, %cst_18 [1] : vector<8x8xf32> to vector<8xf32>
    %60 = vector.shape_cast %59 : vector<8xf32> to vector<8x1xf32>
    %61 = tpu.reciprocal %60 {approx = true} : vector<8x1xf32> -> vector<8x1xf32>
    %62 = vector.broadcast %61 : vector<8x1xf32> to vector<8x8xf32>
    %63 = arith.mulf %58, %62 : vector<8x8xf32>
    %64 = arith.truncf %63 : vector<8x8xf32> to vector<8x8xbf16>
    %cst_19 = arith.constant dense<0.000000e+00> : vector<8x8xf32>
    %65 = tpu.matmul %64, %15, %cst_19 {dimension_numbers = #tpu.dot_dimension_numbers<[1], [0], [0], [1], [0, 0, 1, 1], [], []>} : vector<8x8xbf16>, vector<8x8xbf16>, vector<8x8xf32> -> vector<8x8xf32>
    %66 = arith.truncf %65 : vector<8x8xf32> to vector<8x8xbf16>
    %c0_20 = arith.constant 0 : index
    %c0_21 = arith.constant 0 : index
    %67 = vector.load %arg9[%c0_20, %c0_21] : memref<8x32xbf16, #tpu.memory_space<vmem>>, vector<8x8xbf16>
    tpu.vector_store %arg9[%c0_20, %c0_21], %66 {strides = array<i32>} : memref<8x32xbf16, #tpu.memory_space<vmem>>, vector<8x8xbf16>,
    %68 = vector.extract_strided_slice %5 {offsets = [0, 8], sizes = [8, 8], strides = [1, 1]} : vector<8x32xbf16> to vector<8x8xbf16>
    %c0_22 = arith.constant 0 : index
    %c0_23 = arith.constant 0 : index
    %c8 = arith.constant 8 : index
    %69 = vector.load %arg3[%c0_22, %c0_23, %c8] : memref<1x8x64xbf16, #tpu.memory_space<vmem>>, vector<1x8x8xbf16>
    %70 = vector.shape_cast %69 : vector<1x8x8xbf16> to vector<8x8xbf16>
    %c0_24 = arith.constant 0 : index
    %c0_25 = arith.constant 0 : index
    %c40 = arith.constant 40 : index
    %71 = vector.load %arg3[%c0_24, %c0_25, %c40] : memref<1x8x64xbf16, #tpu.memory_space<vmem>>, vector<1x8x8xbf16>
    %72 = vector.shape_cast %71 : vector<1x8x8xbf16> to vector<8x8xbf16>
    %cst_26 = arith.constant dense<0.000000e+00> : vector<8x8xf32>
    %73 = tpu.matmul %68, %70, %cst_26 {dimension_numbers = #tpu.dot_dimension_numbers<[1], [1], [0], [0], [0, 0, 1, 0], [], []>} : vector<8x8xbf16>, vector<8x8xbf16>, vector<8x8xf32> -> vector<8x8xf32>
    %c1 = arith.constant 1 : index
    %c0_27 = arith.constant 0 : index
    %c0_28 = arith.constant 0 : index
    %74 = vector.load %arg5[%c1, %c0_27, %c0_28] : memref<4x15x8xbf16, #tpu.memory_space<vmem>>, vector<1x15x8xbf16>
    %75 = vector.shape_cast %74 : vector<1x15x8xbf16> to vector<15x8xbf16>
    %cst_29 = arith.constant dense<0.000000e+00> : vector<8x15xf32>
    %76 = tpu.matmul %68, %75, %cst_29 {dimension_numbers = #tpu.dot_dimension_numbers<[1], [1], [0], [0], [0, 0, 1, 0], [], []>} : vector<8x8xbf16>, vector<15x8xbf16>, vector<8x15xf32> -> vector<8x15xf32>
    %c7_i32_30 = arith.constant 7 : i32
    %77 = arith.subi %c7_i32_30, %0 : i32
    %78 = tpu.iota {dimensions = array<i32: 0>} : vector<8x1xi32>
    %79 = vector.broadcast %77 : i32 to vector<8x1xi32>
    %80 = arith.subi %79, %78 : vector<8x1xi32>
    %c4_i32_31 = arith.constant 4 : i32
    %81 = vector.broadcast %c4_i32_31 : i32 to vector<8x1xi32>
    %82 = arith.cmpi sge, %80, %81 : vector<8x1xi32>
    %c4_i32_32 = arith.constant 4 : i32
    %83 = vector.broadcast %c4_i32_32 : i32 to vector<8x1xi32>
    %84 = arith.subi %80, %83 : vector<8x1xi32>
    %85 = arith.select %82, %84, %80 : vector<8x1xi1>, vector<8x1xi32>
    %86 = vector.extract_strided_slice %76 {offsets = [0, 4], sizes = [8, 11], strides = [1, 1]} : vector<8x15xf32> to vector<8x11xf32>
    %87 = vector.extract_strided_slice %76 {offsets = [0, 0], sizes = [8, 11], strides = [1, 1]} : vector<8x15xf32> to vector<8x11xf32>
    %88 = vector.shape_cast %82 : vector<8x1xi1> to vector<8x1xi1>
    %89 = vector.broadcast %88 : vector<8x1xi1> to vector<8x11xi1>
    %90 = arith.select %89, %86, %87 : vector<8x11xi1>, vector<8x11xf32>
    %c2_i32_33 = arith.constant 2 : i32
    %91 = vector.broadcast %c2_i32_33 : i32 to vector<8x1xi32>
    %92 = arith.cmpi sge, %85, %91 : vector<8x1xi32>
    %c2_i32_34 = arith.constant 2 : i32
    %93 = vector.broadcast %c2_i32_34 : i32 to vector<8x1xi32>
    %94 = arith.subi %85, %93 : vector<8x1xi32>
    %95 = arith.select %92, %94, %85 : vector<8x1xi1>, vector<8x1xi32>
    %96 = vector.extract_strided_slice %90 {offsets = [0, 2], sizes = [8, 9], strides = [1, 1]} : vector<8x11xf32> to vector<8x9xf32>
    %97 = vector.extract_strided_slice %90 {offsets = [0, 0], sizes = [8, 9], strides = [1, 1]} : vector<8x11xf32> to vector<8x9xf32>
    %98 = vector.shape_cast %92 : vector<8x1xi1> to vector<8x1xi1>
    %99 = vector.broadcast %98 : vector<8x1xi1> to vector<8x9xi1>
    %100 = arith.select %99, %96, %97 : vector<8x9xi1>, vector<8x9xf32>
    %c1_i32_35 = arith.constant 1 : i32
    %101 = vector.broadcast %c1_i32_35 : i32 to vector<8x1xi32>
    %102 = arith.cmpi sge, %95, %101 : vector<8x1xi32>
    %103 = vector.extract_strided_slice %100 {offsets = [0, 1], sizes = [8, 8], strides = [1, 1]} : vector<8x9xf32> to vector<8x8xf32>
    %104 = vector.extract_strided_slice %100 {offsets = [0, 0], sizes = [8, 8], strides = [1, 1]} : vector<8x9xf32> to vector<8x8xf32>
    %105 = vector.shape_cast %102 : vector<8x1xi1> to vector<8x1xi1>
    %106 = vector.broadcast %105 : vector<8x1xi1> to vector<8x8xi1>
    %107 = arith.select %106, %103, %104 : vector<8x8xi1>, vector<8x8xf32>
    %108 = arith.addf %73, %107 : vector<8x8xf32>
    %cst_36 = arith.constant -1.000000e+30 : f32
    %109 = vector.broadcast %cst_36 : f32 to vector<8x8xf32>
    %110 = arith.select %10, %108, %109 : vector<8x8xi1>, vector<8x8xf32>
    %cst_37 = arith.constant dense<0xFF800000> : vector<8xf32>
    %111 = vector.multi_reduction <maximumf>, %110, %cst_37 [1] : vector<8x8xf32> to vector<8xf32>
    %112 = vector.shape_cast %111 : vector<8xf32> to vector<8x1xf32>
    %113 = vector.broadcast %112 : vector<8x1xf32> to vector<8x8xf32>
    %114 = arith.subf %110, %113 : vector<8x8xf32>
    %115 = math.exp %114 : vector<8x8xf32>
    %cst_38 = arith.constant dense<0.000000e+00> : vector<8xf32>
    %116 = vector.multi_reduction <add>, %115, %cst_38 [1] : vector<8x8xf32> to vector<8xf32>
    %117 = vector.shape_cast %116 : vector<8xf32> to vector<8x1xf32>
    %118 = tpu.reciprocal %117 {approx = true} : vector<8x1xf32> -> vector<8x1xf32>
    %119 = vector.broadcast %118 : vector<8x1xf32> to vector<8x8xf32>
    %120 = arith.mulf %115, %119 : vector<8x8xf32>
    %121 = arith.truncf %120 : vector<8x8xf32> to vector<8x8xbf16>
    %cst_39 = arith.constant dense<0.000000e+00> : vector<8x8xf32>
    %122 = tpu.matmul %121, %72, %cst_39 {dimension_numbers = #tpu.dot_dimension_numbers<[1], [0], [0], [1], [0, 0, 1, 1], [], []>} : vector<8x8xbf16>, vector<8x8xbf16>, vector<8x8xf32> -> vector<8x8xf32>
    %123 = arith.truncf %122 : vector<8x8xf32> to vector<8x8xbf16>
    %c0_40 = arith.constant 0 : index
    %c8_41 = arith.constant 8 : index
    %124 = vector.load %arg9[%c0_40, %c8_41] : memref<8x32xbf16, #tpu.memory_space<vmem>>, vector<8x8xbf16>
    tpu.vector_store %arg9[%c0_40, %c8_41], %123 {strides = array<i32>} : memref<8x32xbf16, #tpu.memory_space<vmem>>, vector<8x8xbf16>,
    %125 = vector.extract_strided_slice %5 {offsets = [0, 16], sizes = [8, 8], strides = [1, 1]} : vector<8x32xbf16> to vector<8x8xbf16>
    %c0_42 = arith.constant 0 : index
    %c0_43 = arith.constant 0 : index
    %c16 = arith.constant 16 : index
    %126 = vector.load %arg3[%c0_42, %c0_43, %c16] : memref<1x8x64xbf16, #tpu.memory_space<vmem>>, vector<1x8x8xbf16>
    %127 = vector.shape_cast %126 : vector<1x8x8xbf16> to vector<8x8xbf16>
    %c0_44 = arith.constant 0 : index
    %c0_45 = arith.constant 0 : index
    %c48 = arith.constant 48 : index
    %128 = vector.load %arg3[%c0_44, %c0_45, %c48] : memref<1x8x64xbf16, #tpu.memory_space<vmem>>, vector<1x8x8xbf16>
    %129 = vector.shape_cast %128 : vector<1x8x8xbf16> to vector<8x8xbf16>
    %cst_46 = arith.constant dense<0.000000e+00> : vector<8x8xf32>
    %130 = tpu.matmul %125, %127, %cst_46 {dimension_numbers = #tpu.dot_dimension_numbers<[1], [1], [0], [0], [0, 0, 1, 0], [], []>} : vector<8x8xbf16>, vector<8x8xbf16>, vector<8x8xf32> -> vector<8x8xf32>
    %c2 = arith.constant 2 : index
    %c0_47 = arith.constant 0 : index
    %c0_48 = arith.constant 0 : index
    %131 = vector.load %arg5[%c2, %c0_47, %c0_48] : memref<4x15x8xbf16, #tpu.memory_space<vmem>>, vector<1x15x8xbf16>
    %132 = vector.shape_cast %131 : vector<1x15x8xbf16> to vector<15x8xbf16>
    %cst_49 = arith.constant dense<0.000000e+00> : vector<8x15xf32>
    %133 = tpu.matmul %125, %132, %cst_49 {dimension_numbers = #tpu.dot_dimension_numbers<[1], [1], [0], [0], [0, 0, 1, 0], [], []>} : vector<8x8xbf16>, vector<15x8xbf16>, vector<8x15xf32> -> vector<8x15xf32>
    %c7_i32_50 = arith.constant 7 : i32
    %134 = arith.subi %c7_i32_50, %0 : i32
    %135 = tpu.iota {dimensions = array<i32: 0>} : vector<8x1xi32>
    %136 = vector.broadcast %134 : i32 to vector<8x1xi32>
    %137 = arith.subi %136, %135 : vector<8x1xi32>
    %c4_i32_51 = arith.constant 4 : i32
    %138 = vector.broadcast %c4_i32_51 : i32 to vector<8x1xi32>
    %139 = arith.cmpi sge, %137, %138 : vector<8x1xi32>
    %c4_i32_52 = arith.constant 4 : i32
    %140 = vector.broadcast %c4_i32_52 : i32 to vector<8x1xi32>
    %141 = arith.subi %137, %140 : vector<8x1xi32>
    %142 = arith.select %139, %141, %137 : vector<8x1xi1>, vector<8x1xi32>
    %143 = vector.extract_strided_slice %133 {offsets = [0, 4], sizes = [8, 11], strides = [1, 1]} : vector<8x15xf32> to vector<8x11xf32>
    %144 = vector.extract_strided_slice %133 {offsets = [0, 0], sizes = [8, 11], strides = [1, 1]} : vector<8x15xf32> to vector<8x11xf32>
    %145 = vector.shape_cast %139 : vector<8x1xi1> to vector<8x1xi1>
    %146 = vector.broadcast %145 : vector<8x1xi1> to vector<8x11xi1>
    %147 = arith.select %146, %143, %144 : vector<8x11xi1>, vector<8x11xf32>
    %c2_i32_53 = arith.constant 2 : i32
    %148 = vector.broadcast %c2_i32_53 : i32 to vector<8x1xi32>
    %149 = arith.cmpi sge, %142, %148 : vector<8x1xi32>
    %c2_i32_54 = arith.constant 2 : i32
    %150 = vector.broadcast %c2_i32_54 : i32 to vector<8x1xi32>
    %151 = arith.subi %142, %150 : vector<8x1xi32>
    %152 = arith.select %149, %151, %142 : vector<8x1xi1>, vector<8x1xi32>
    %153 = vector.extract_strided_slice %147 {offsets = [0, 2], sizes = [8, 9], strides = [1, 1]} : vector<8x11xf32> to vector<8x9xf32>
    %154 = vector.extract_strided_slice %147 {offsets = [0, 0], sizes = [8, 9], strides = [1, 1]} : vector<8x11xf32> to vector<8x9xf32>
    %155 = vector.shape_cast %149 : vector<8x1xi1> to vector<8x1xi1>
    %156 = vector.broadcast %155 : vector<8x1xi1> to vector<8x9xi1>
    %157 = arith.select %156, %153, %154 : vector<8x9xi1>, vector<8x9xf32>
    %c1_i32_55 = arith.constant 1 : i32
    %158 = vector.broadcast %c1_i32_55 : i32 to vector<8x1xi32>
    %159 = arith.cmpi sge, %152, %158 : vector<8x1xi32>
    %160 = vector.extract_strided_slice %157 {offsets = [0, 1], sizes = [8, 8], strides = [1, 1]} : vector<8x9xf32> to vector<8x8xf32>
    %161 = vector.extract_strided_slice %157 {offsets = [0, 0], sizes = [8, 8], strides = [1, 1]} : vector<8x9xf32> to vector<8x8xf32>
    %162 = vector.shape_cast %159 : vector<8x1xi1> to vector<8x1xi1>
    %163 = vector.broadcast %162 : vector<8x1xi1> to vector<8x8xi1>
    %164 = arith.select %163, %160, %161 : vector<8x8xi1>, vector<8x8xf32>
    %165 = arith.addf %130, %164 : vector<8x8xf32>
    %cst_56 = arith.constant -1.000000e+30 : f32
    %166 = vector.broadcast %cst_56 : f32 to vector<8x8xf32>
    %167 = arith.select %10, %165, %166 : vector<8x8xi1>, vector<8x8xf32>
    %cst_57 = arith.constant dense<0xFF800000> : vector<8xf32>
    %168 = vector.multi_reduction <maximumf>, %167, %cst_57 [1] : vector<8x8xf32> to vector<8xf32>
    %169 = vector.shape_cast %168 : vector<8xf32> to vector<8x1xf32>
    %170 = vector.broadcast %169 : vector<8x1xf32> to vector<8x8xf32>
    %171 = arith.subf %167, %170 : vector<8x8xf32>
    %172 = math.exp %171 : vector<8x8xf32>
    %cst_58 = arith.constant dense<0.000000e+00> : vector<8xf32>
    %173 = vector.multi_reduction <add>, %172, %cst_58 [1] : vector<8x8xf32> to vector<8xf32>
    %174 = vector.shape_cast %173 : vector<8xf32> to vector<8x1xf32>
    %175 = tpu.reciprocal %174 {approx = true} : vector<8x1xf32> -> vector<8x1xf32>
    %176 = vector.broadcast %175 : vector<8x1xf32> to vector<8x8xf32>
    %177 = arith.mulf %172, %176 : vector<8x8xf32>
    %178 = arith.truncf %177 : vector<8x8xf32> to vector<8x8xbf16>
    %cst_59 = arith.constant dense<0.000000e+00> : vector<8x8xf32>
    %179 = tpu.matmul %178, %129, %cst_59 {dimension_numbers = #tpu.dot_dimension_numbers<[1], [0], [0], [1], [0, 0, 1, 1], [], []>} : vector<8x8xbf16>, vector<8x8xbf16>, vector<8x8xf32> -> vector<8x8xf32>
    %180 = arith.truncf %179 : vector<8x8xf32> to vector<8x8xbf16>
    %c0_60 = arith.constant 0 : index
    %c16_61 = arith.constant 16 : index
    %181 = vector.load %arg9[%c0_60, %c16_61] : memref<8x32xbf16, #tpu.memory_space<vmem>>, vector<8x8xbf16>
    tpu.vector_store %arg9[%c0_60, %c16_61], %180 {strides = array<i32>} : memref<8x32xbf16, #tpu.memory_space<vmem>>, vector<8x8xbf16>,
    %182 = vector.extract_strided_slice %5 {offsets = [0, 24], sizes = [8, 8], strides = [1, 1]} : vector<8x32xbf16> to vector<8x8xbf16>
    %c0_62 = arith.constant 0 : index
    %c0_63 = arith.constant 0 : index
    %c24 = arith.constant 24 : index
    %183 = vector.load %arg3[%c0_62, %c0_63, %c24] : memref<1x8x64xbf16, #tpu.memory_space<vmem>>, vector<1x8x8xbf16>
    %184 = vector.shape_cast %183 : vector<1x8x8xbf16> to vector<8x8xbf16>
    %c0_64 = arith.constant 0 : index
    %c0_65 = arith.constant 0 : index
    %c56 = arith.constant 56 : index
    %185 = vector.load %arg3[%c0_64, %c0_65, %c56] : memref<1x8x64xbf16, #tpu.memory_space<vmem>>, vector<1x8x8xbf16>
    %186 = vector.shape_cast %185 : vector<1x8x8xbf16> to vector<8x8xbf16>
    %cst_66 = arith.constant dense<0.000000e+00> : vector<8x8xf32>
    %187 = tpu.matmul %182, %184, %cst_66 {dimension_numbers = #tpu.dot_dimension_numbers<[1], [1], [0], [0], [0, 0, 1, 0], [], []>} : vector<8x8xbf16>, vector<8x8xbf16>, vector<8x8xf32> -> vector<8x8xf32>
    %c3 = arith.constant 3 : index
    %c0_67 = arith.constant 0 : index
    %c0_68 = arith.constant 0 : index
    %188 = vector.load %arg5[%c3, %c0_67, %c0_68] : memref<4x15x8xbf16, #tpu.memory_space<vmem>>, vector<1x15x8xbf16>
    %189 = vector.shape_cast %188 : vector<1x15x8xbf16> to vector<15x8xbf16>
    %cst_69 = arith.constant dense<0.000000e+00> : vector<8x15xf32>
    %190 = tpu.matmul %182, %189, %cst_69 {dimension_numbers = #tpu.dot_dimension_numbers<[1], [1], [0], [0], [0, 0, 1, 0], [], []>} : vector<8x8xbf16>, vector<15x8xbf16>, vector<8x15xf32> -> vector<8x15xf32>
    %c7_i32_70 = arith.constant 7 : i32
    %191 = arith.subi %c7_i32_70, %0 : i32
    %192 = tpu.iota {dimensions = array<i32: 0>} : vector<8x1xi32>
    %193 = vector.broadcast %191 : i32 to vector<8x1xi32>
    %194 = arith.subi %193, %192 : vector<8x1xi32>
    %c4_i32_71 = arith.constant 4 : i32
    %195 = vector.broadcast %c4_i32_71 : i32 to vector<8x1xi32>
    %196 = arith.cmpi sge, %194, %195 : vector<8x1xi32>
    %c4_i32_72 = arith.constant 4 : i32
    %197 = vector.broadcast %c4_i32_72 : i32 to vector<8x1xi32>
    %198 = arith.subi %194, %197 : vector<8x1xi32>
    %199 = arith.select %196, %198, %194 : vector<8x1xi1>, vector<8x1xi32>
    %200 = vector.extract_strided_slice %190 {offsets = [0, 4], sizes = [8, 11], strides = [1, 1]} : vector<8x15xf32> to vector<8x11xf32>
    %201 = vector.extract_strided_slice %190 {offsets = [0, 0], sizes = [8, 11], strides = [1, 1]} : vector<8x15xf32> to vector<8x11xf32>
    %202 = vector.shape_cast %196 : vector<8x1xi1> to vector<8x1xi1>
    %203 = vector.broadcast %202 : vector<8x1xi1> to vector<8x11xi1>
    %204 = arith.select %203, %200, %201 : vector<8x11xi1>, vector<8x11xf32>
    %c2_i32_73 = arith.constant 2 : i32
    %205 = vector.broadcast %c2_i32_73 : i32 to vector<8x1xi32>
    %206 = arith.cmpi sge, %199, %205 : vector<8x1xi32>
    %c2_i32_74 = arith.constant 2 : i32
    %207 = vector.broadcast %c2_i32_74 : i32 to vector<8x1xi32>
    %208 = arith.subi %199, %207 : vector<8x1xi32>
    %209 = arith.select %206, %208, %199 : vector<8x1xi1>, vector<8x1xi32>
    %210 = vector.extract_strided_slice %204 {offsets = [0, 2], sizes = [8, 9], strides = [1, 1]} : vector<8x11xf32> to vector<8x9xf32>
    %211 = vector.extract_strided_slice %204 {offsets = [0, 0], sizes = [8, 9], strides = [1, 1]} : vector<8x11xf32> to vector<8x9xf32>
    %212 = vector.shape_cast %206 : vector<8x1xi1> to vector<8x1xi1>
    %213 = vector.broadcast %212 : vector<8x1xi1> to vector<8x9xi1>
    %214 = arith.select %213, %210, %211 : vector<8x9xi1>, vector<8x9xf32>
    %c1_i32_75 = arith.constant 1 : i32
    %215 = vector.broadcast %c1_i32_75 : i32 to vector<8x1xi32>
    %216 = arith.cmpi sge, %209, %215 : vector<8x1xi32>
    %217 = vector.extract_strided_slice %214 {offsets = [0, 1], sizes = [8, 8], strides = [1, 1]} : vector<8x9xf32> to vector<8x8xf32>
    %218 = vector.extract_strided_slice %214 {offsets = [0, 0], sizes = [8, 8], strides = [1, 1]} : vector<8x9xf32> to vector<8x8xf32>
    %219 = vector.shape_cast %216 : vector<8x1xi1> to vector<8x1xi1>
    %220 = vector.broadcast %219 : vector<8x1xi1> to vector<8x8xi1>
    %221 = arith.select %220, %217, %218 : vector<8x8xi1>, vector<8x8xf32>
    %222 = arith.addf %187, %221 : vector<8x8xf32>
    %cst_76 = arith.constant -1.000000e+30 : f32
    %223 = vector.broadcast %cst_76 : f32 to vector<8x8xf32>
    %224 = arith.select %10, %222, %223 : vector<8x8xi1>, vector<8x8xf32>
    %cst_77 = arith.constant dense<0xFF800000> : vector<8xf32>
    %225 = vector.multi_reduction <maximumf>, %224, %cst_77 [1] : vector<8x8xf32> to vector<8xf32>
    %226 = vector.shape_cast %225 : vector<8xf32> to vector<8x1xf32>
    %227 = vector.broadcast %226 : vector<8x1xf32> to vector<8x8xf32>
    %228 = arith.subf %224, %227 : vector<8x8xf32>
    %229 = math.exp %228 : vector<8x8xf32>
    %cst_78 = arith.constant dense<0.000000e+00> : vector<8xf32>
    %230 = vector.multi_reduction <add>, %229, %cst_78 [1] : vector<8x8xf32> to vector<8xf32>
    %231 = vector.shape_cast %230 : vector<8xf32> to vector<8x1xf32>
    %232 = tpu.reciprocal %231 {approx = true} : vector<8x1xf32> -> vector<8x1xf32>
    %233 = vector.broadcast %232 : vector<8x1xf32> to vector<8x8xf32>
    %234 = arith.mulf %229, %233 : vector<8x8xf32>
    %235 = arith.truncf %234 : vector<8x8xf32> to vector<8x8xbf16>
    %cst_79 = arith.constant dense<0.000000e+00> : vector<8x8xf32>
    %236 = tpu.matmul %235, %186, %cst_79 {dimension_numbers = #tpu.dot_dimension_numbers<[1], [0], [0], [1], [0, 0, 1, 1], [], []>} : vector<8x8xbf16>, vector<8x8xbf16>, vector<8x8xf32> -> vector<8x8xf32>
    %237 = arith.truncf %236 : vector<8x8xf32> to vector<8x8xbf16>
    %c0_80 = arith.constant 0 : index
    %c24_81 = arith.constant 24 : index
    %238 = vector.load %arg9[%c0_80, %c24_81] : memref<8x32xbf16, #tpu.memory_space<vmem>>, vector<8x8xbf16>
    tpu.vector_store %arg9[%c0_80, %c24_81], %237 {strides = array<i32>} : memref<8x32xbf16, #tpu.memory_space<vmem>>, vector<8x8xbf16>,
    %c0_82 = arith.constant 0 : index
    %c0_83 = arith.constant 0 : index
    %239 = vector.load %arg9[%c0_82, %c0_83] : memref<8x32xbf16, #tpu.memory_space<vmem>>, vector<8x32xbf16>
    %c0_84 = arith.constant 0 : index
    %c0_85 = arith.constant 0 : index
    %240 = vector.load %arg6[%c0_84, %c0_85] : memref<32x32xbf16, #tpu.memory_space<vmem>>, vector<32x32xbf16>
    %cst_86 = arith.constant dense<0.000000e+00> : vector<8x32xf32>
    %241 = tpu.matmul %239, %240, %cst_86 {dimension_numbers = #tpu.dot_dimension_numbers<[1], [0], [0], [1], [0, 0, 1, 1], [], []>} : vector<8x32xbf16>, vector<32x32xbf16>, vector<8x32xf32> -> vector<8x32xf32>
    %c0_87 = arith.constant 0 : index
    %c0_88 = arith.constant 0 : index
    %242 = vector.load %arg7[%c0_87, %c0_88] : memref<1x32xf32, #tpu.memory_space<vmem>>, vector<1x32xf32>
    %243 = vector.broadcast %242 : vector<1x32xf32> to vector<8x32xf32>
    %244 = arith.addf %241, %243 : vector<8x32xf32>
    %c0_89 = arith.constant 0 : index
    %c0_90 = arith.constant 0 : index
    %c0_91 = arith.constant 0 : index
    %245 = vector.load %arg8[%c0_89, %c0_90, %c0_91] : memref<1x8x32xf32, #tpu.memory_space<vmem>>, vector<1x8x32xf32>
    %246 = vector.shape_cast %245 : vector<1x8x32xf32> to vector<8x32xf32>
    %247 = vector.shape_cast %244 : vector<8x32xf32> to vector<1x8x32xf32>
    tpu.vector_store %arg8[%c0_89, %c0_90, %c0_91], %247 {strides = array<i32>} : memref<1x8x32xf32, #tpu.memory_space<vmem>>, vector<1x8x32xf32>,
    return
  }
  func.func @transform_0(%arg0: i32, %arg1: i32) -> (i32, i32, i32) {
    %c0_i32 = arith.constant 0 : i32
    %c0_i32_0 = arith.constant 0 : i32
    return %arg0, %arg1, %c0_i32 : i32, i32, i32
  }
  func.func @transform_1(%arg0: i32, %arg1: i32) -> (i32, i32, i32) {
    %c0_i32 = arith.constant 0 : i32
    %c0_i32_0 = arith.constant 0 : i32
    %c0_i32_1 = arith.constant 0 : i32
    return %arg0, %c0_i32, %c0_i32_0 : i32, i32, i32
  }
  func.func @transform_2(%arg0: i32, %arg1: i32) -> (i32, i32) {
    %c0_i32 = arith.constant 0 : i32
    %c0_i32_0 = arith.constant 0 : i32
    %c0_i32_1 = arith.constant 0 : i32
    return %c0_i32, %c0_i32_0 : i32, i32
  }
  func.func @transform_3(%arg0: i32, %arg1: i32) -> (i32, i32, i32) {
    %c0_i32 = arith.constant 0 : i32
    %c0_i32_0 = arith.constant 0 : i32
    %c0_i32_1 = arith.constant 0 : i32
    %c0_i32_2 = arith.constant 0 : i32
    return %c0_i32, %c0_i32_0, %c0_i32_1 : i32, i32, i32
  }
  func.func @transform_4(%arg0: i32, %arg1: i32) -> (i32, i32) {
    %c0_i32 = arith.constant 0 : i32
    %c0_i32_0 = arith.constant 0 : i32
    %c0_i32_1 = arith.constant 0 : i32
    return %c0_i32, %c0_i32_0 : i32, i32
  }
  func.func @transform_5(%arg0: i32, %arg1: i32) -> (i32, i32) {
    %c0_i32 = arith.constant 0 : i32
    %c0_i32_0 = arith.constant 0 : i32
    %c0_i32_1 = arith.constant 0 : i32
    return %c0_i32, %c0_i32_0 : i32, i32
  }
  func.func @transform_6(%arg0: i32, %arg1: i32) -> (i32, i32, i32) {
    %c0_i32 = arith.constant 0 : i32
    %c0_i32_0 = arith.constant 0 : i32
    return %arg0, %arg1, %c0_i32 : i32, i32, i32
  }
}

</mosaic_0001>

<llo_original>
// kernel: multi_head_relative_attention.1
$region0: #{multi_head_relative_attention.1}
  #allocation0 [shape = 'u32[]', space=smem, size = 0x4, offset = 0x4, fixed_abs, tag = 'smem constant byte address 0x4 - core index']
  #allocation1 [shape = 'u32[144,128]{1,0:T(1,128)}', space=vmem, size = 0x12000, scoped, tag = 'internal scratch']
  #allocation2 [shape = 'bf16[8,32]{1,0:T(8,128)(2,1)}', space=vmem, size = 0x800, scoped, tag = 'scratch operand']
  %s0 = inlined_call_operand.hbm [shape: bf16[2,8,32], index: 0, kind: input, shape index: {}]
  %s1 = inlined_call_operand.hbm [shape: bf16[2,8,64], index: 1, kind: input, shape index: {}]
  %s2 = inlined_call_operand.hbm [shape: bf16[32,32], index: 2, kind: input, shape index: {}]
  %s3 = inlined_call_operand.hbm [shape: bf16[4,15,8], index: 3, kind: input, shape index: {}]
  %s4 = inlined_call_operand.hbm [shape: bf16[32,32], index: 4, kind: input, shape index: {}]
  %s5 = inlined_call_operand.hbm [shape: f32[1,32], index: 5, kind: input, shape index: {}]
  %s6 = inlined_call_operand.hbm [shape: f32[2,8,32], index: 6, kind: output, shape index: {}]
  %s7 = sld [smem:[#allocation0]]
  $region81: #{multi_head_relative_attention.1} parent=0
    _
  %s9 = ssub.s32 1, %s7
  %s10 = scalar_select 0, %s9, %s7
  $region1: #{multi_head_relative_attention.1} parent=0
    #allocation3 [shape = 'u8[4096]{0}', space=vmem, size = 0x1000, scoped, tag = 'input window, operand 0']
    #allocation4 [shape = 's32[2]{0}', space=sflag, size = 0x8, scoped, tag = 'scoped memory for multi_head_relative_attention.1']
    #allocation5 [shape = 's32[2]{0}', space=sflag, size = 0x8, scoped, tag = 'scoped memory for multi_head_relative_attention.1']
    #allocation6 [shape = 'u8[4096]{0}', space=vmem, size = 0x1000, scoped, tag = 'input window, operand 1']
    #allocation7 [shape = 's32[2]{0}', space=sflag, size = 0x8, scoped, tag = 'scoped memory for multi_head_relative_attention.1']
    #allocation8 [shape = 'u8[8192]{0}', space=vmem, size = 0x2000, scoped, tag = 'input window, operand 2, single buffered']
    #allocation9 [shape = 'u8[16384]{0}', space=vmem, size = 0x4000, scoped, tag = 'input window, operand 3, single buffered']
    #allocation10 [shape = 's32[1]{0}', space=sflag, size = 0x4, scoped, tag = 'scoped memory for multi_head_relative_attention.1']
    #allocation11 [shape = 'u8[8192]{0}', space=vmem, size = 0x2000, scoped, tag = 'input window, operand 4, single buffered']
    #allocation12 [shape = 'u8[512]{0}', space=vmem, size = 0x400, scoped, tag = 'input window, operand 5, single buffered']
    #allocation13 [shape = 's32[1]{0}', space=sflag, size = 0x4, scoped, tag = 'scoped memory for multi_head_relative_attention.1']
    #allocation14 [shape = 'u8[8192]{0}', space=vmem, size = 0x2000, scoped, tag = 'output window, operand 0']
    %11 = vsyncpa [#allocation4], 0
    %s12 = scalar_lea.sflag [#allocation4], 1
    %13 = vsyncpa %s12, 0
    %14 = vsyncpa [#allocation7], 0
    %s15 = scalar_lea.sflag [#allocation7], 1
    %16 = vsyncpa %s15, 0
    %17 = vsyncpa [#allocation10], 0
    %18 = vsyncpa [#allocation13], 0
    %19 = vsyncpa [#allocation5], 0
    %s20 = scalar_lea.sflag [#allocation5], 1
    %21 = vsyncpa %s20, 0
    loop: start=0, step=1, limit=4
    $region2: #{multi_head_relative_attention.1} parent=1 // loop_pre_header
      _
    $region3: #{multi_head_relative_attention.1} parent=1 // loop_header
      %s23 = sphi 0, %s27
      %p24 = scmp.ge.s32.totalorder %s23, 4
      %s30 = sphi 0, %s42
      %s31 = sphi 0, %s38
      %s32 = sphi 0, %s30
      %s33 = sphi 0, %s31
      %s34 = sphi 0, %s32
      %s35 = sphi 0, %s33
      %s47 = sphi 0, %s49
      %s50 = sphi 0, %s47
      %s51 = sphi 0, %s50
      %s67 = sphi 0, %s51
      %s73 = sphi 0, %s75
      %s76 = sphi 0, %s73
      %s77 = sphi 0, %s76
      %s93 = sphi 0, %s77
      %s97 = sphi 0, %s97
      %s99 = sphi 0, %s97
      %s100 = sphi 0, %s99
      %s114 = sphi 0, %s100
      %s118 = sphi 0, %s118
      %s120 = sphi 0, %s118
      %s121 = sphi 0, %s120
      %s135 = sphi 0, %s121
      %s139 = sphi 0, %s139
      %s141 = sphi 0, %s139
      %s142 = sphi 0, %s141
      %s156 = sphi 0, %s142
      %s160 = sphi 0, %s160
      %s162 = sphi 0, %s160
      %s163 = sphi 0, %s162
      %s177 = sphi 0, %s163
      %s185 = sphi 0, %s187
      %s188 = sphi 0, %s185
      %s189 = sphi 0, %s188
      %s205 = sphi 0, %s189
    $region4: #{multi_head_relative_attention.1} parent=1 // loop_header_branch
      %26 = sbr.rel (%p24) target = $region8
    $region5: #{multi_head_relative_attention.1} parent=1 // loop_body
      %s28 = ssub.s32 %s23, 1
      %s29 = ssub.s32 %s23, 2
      %s36 = sadd.s32 1, %s31
      %p37 = scmp.ge.s32.totalorder %s36, 1
      %s38 = scalar_select %p37, 0, %s36
      %s39 = sadd.s32 1, %s30
      %s40 = scalar_select %p37, %s39, %s30
      %p41 = scmp.ge.s32.totalorder %s40, 2
      %s42 = scalar_select %p41, 0, %s40
      %s43 = ssub.s32 %s30, %s42
      %s44 = ssub.s32 %s31, %s38
      %s45 = sor.u32 %s43, %s44
      %p46 = scmp.eq.s32.totalorder %s45, 0
      %s48 = sadd.s32 %s47, 1
      %s49 = scalar_select %p46, %s47, %s48
      %p52 = pneg %p46
      %p53 = scmp.eq.s32.totalorder %s23, 1
      %p54 = por %p52, %p53
      %p55 = scmp.ne.s32.totalorder %s47, %s50
      %p56 = scmp.eq.s32.totalorder %s23, 0
      %p57 = por %p55, %p56
      %p58 = scmp.ne.s32.totalorder %s47, %s50
      %p59 = scmp.eq.s32.totalorder %s28, 1
      %p60 = por %p58, %p59
      %p61 = scmp.ne.s32.totalorder %s50, %s51
      %p62 = scmp.eq.s32.totalorder %s28, 0
      %p63 = por %p61, %p62
      %p64 = scmp.ne.s32.totalorder %s50, %s51
      %p65 = scmp.eq.s32.totalorder %s29, 1
      %p66 = por %p64, %p65
      %p68 = scmp.ne.s32.totalorder %s51, %s67
      %p69 = scmp.eq.s32.totalorder %s29, 0
      %p70 = por %p68, %p69
      %s71 = ssub.s32 %s30, %s42
      %p72 = scmp.eq.s32.totalorder %s71, 0
      %s74 = sadd.s32 %s73, 1
      %s75 = scalar_select %p72, %s73, %s74
      %p78 = pneg %p72
      %p79 = scmp.eq.s32.totalorder %s23, 1
      %p80 = por %p78, %p79
      %p81 = scmp.ne.s32.totalorder %s73, %s76
      %p82 = scmp.eq.s32.totalorder %s23, 0
      %p83 = por %p81, %p82
      %p84 = scmp.ne.s32.totalorder %s73, %s76
      %p85 = scmp.eq.s32.totalorder %s28, 1
      %p86 = por %p84, %p85
      %p87 = scmp.ne.s32.totalorder %s76, %s77
      %p88 = scmp.eq.s32.totalorder %s28, 0
      %p89 = por %p87, %p88
      %p90 = scmp.ne.s32.totalorder %s76, %s77
      %p91 = scmp.eq.s32.totalorder %s29, 1
      %p92 = por %p90, %p91
      %p94 = scmp.ne.s32.totalorder %s77, %s93
      %p95 = scmp.eq.s32.totalorder %s29, 0
      %p96 = por %p94, %p95
      %s98 = sadd.s32 %s97, 1
      %p101 = scmp.eq.s32.totalorder %s23, 1
      %p102 = scmp.ne.s32.totalorder %s97, %s99
      %p103 = scmp.eq.s32.totalorder %s23, 0
      %p104 = por %p102, %p103
      %p105 = scmp.ne.s32.totalorder %s97, %s99
      %p106 = scmp.eq.s32.totalorder %s28, 1
      %p107 = por %p105, %p106
      %p108 = scmp.ne.s32.totalorder %s99, %s100
      %p109 = scmp.eq.s32.totalorder %s28, 0
      %p110 = por %p108, %p109
      %p111 = scmp.ne.s32.totalorder %s99, %s100
      %p112 = scmp.eq.s32.totalorder %s29, 1
      %p113 = por %p111, %p112
      %p115 = scmp.ne.s32.totalorder %s100, %s114
      %p116 = scmp.eq.s32.totalorder %s29, 0
      %p117 = por %p115, %p116
      %s119 = sadd.s32 %s118, 1
      %p122 = scmp.eq.s32.totalorder %s23, 1
      %p123 = scmp.ne.s32.totalorder %s118, %s120
      %p124 = scmp.eq.s32.totalorder %s23, 0
      %p125 = por %p123, %p124
      %p126 = scmp.ne.s32.totalorder %s118, %s120
      %p127 = scmp.eq.s32.totalorder %s28, 1
      %p128 = por %p126, %p127
      %p129 = scmp.ne.s32.totalorder %s120, %s121
      %p130 = scmp.eq.s32.totalorder %s28, 0
      %p131 = por %p129, %p130
      %p132 = scmp.ne.s32.totalorder %s120, %s121
      %p133 = scmp.eq.s32.totalorder %s29, 1
      %p134 = por %p132, %p133
      %p136 = scmp.ne.s32.totalorder %s121, %s135
      %p137 = scmp.eq.s32.totalorder %s29, 0
      %p138 = por %p136, %p137
      %s140 = sadd.s32 %s139, 1
      %p143 = scmp.eq.s32.totalorder %s23, 1
      %p144 = scmp.ne.s32.totalorder %s139, %s141
      %p145 = scmp.eq.s32.totalorder %s23, 0
      %p146 = por %p144, %p145
      %p147 = scmp.ne.s32.totalorder %s139, %s141
      %p148 = scmp.eq.s32.totalorder %s28, 1
      %p149 = por %p147, %p148
      %p150 = scmp.ne.s32.totalorder %s141, %s142
      %p151 = scmp.eq.s32.totalorder %s28, 0
      %p152 = por %p150, %p151
      %p153 = scmp.ne.s32.totalorder %s141, %s142
      %p154 = scmp.eq.s32.totalorder %s29, 1
      %p155 = por %p153, %p154
      %p157 = scmp.ne.s32.totalorder %s142, %s156
      %p158 = scmp.eq.s32.totalorder %s29, 0
      %p159 = por %p157, %p158
      %s161 = sadd.s32 %s160, 1
      %p164 = scmp.eq.s32.totalorder %s23, 1
      %p165 = scmp.ne.s32.totalorder %s160, %s162
      %p166 = scmp.eq.s32.totalorder %s23, 0
      %p167 = por %p165, %p166
      %p168 = scmp.ne.s32.totalorder %s160, %s162
      %p169 = scmp.eq.s32.totalorder %s28, 1
      %p170 = por %p168, %p169
      %p171 = scmp.ne.s32.totalorder %s162, %s163
      %p172 = scmp.eq.s32.totalorder %s28, 0
      %p173 = por %p171, %p172
      %p174 = scmp.ne.s32.totalorder %s162, %s163
      %p175 = scmp.eq.s32.totalorder %s29, 1
      %p176 = por %p174, %p175
      %p178 = scmp.ne.s32.totalorder %s163, %s177
      %p179 = scmp.eq.s32.totalorder %s29, 0
      %p180 = por %p178, %p179
      %s181 = ssub.s32 %s30, %s42
      %s182 = ssub.s32 %s31, %s38
      %s183 = sor.u32 %s181, %s182
      %p184 = scmp.eq.s32.totalorder %s183, 0
      %s186 = sadd.s32 %s185, 1
      %s187 = scalar_select %p184, %s185, %s186
      %p190 = pneg %p184
      %p191 = scmp.eq.s32.totalorder %s23, 1
      %p192 = por %p190, %p191
      %p193 = scmp.ne.s32.totalorder %s185, %s188
      %p194 = scmp.eq.s32.totalorder %s23, 0
      %p195 = por %p193, %p194
      %p196 = scmp.ne.s32.totalorder %s185, %s188
      %p197 = scmp.eq.s32.totalorder %s28, 1
      %p198 = por %p196, %p197
      %p199 = scmp.ne.s32.totalorder %s188, %s189
      %p200 = scmp.eq.s32.totalorder %s28, 0
      %p201 = por %p199, %p200
      %p202 = scmp.ne.s32.totalorder %s188, %s189
      %p203 = scmp.eq.s32.totalorder %s29, 1
      %p204 = por %p202, %p203
      %p206 = scmp.ne.s32.totalorder %s189, %s205
      %p207 = scmp.eq.s32.totalorder %s29, 0
      %p208 = por %p206, %p207
      %p209 = scmp.le.s32.totalorder 1, %s23
      %p210 = scmp.lt.s32.totalorder %s23, 3
      %p211 = pnand %p209, %p210
      %p212 = pneg %p211
      // Predicated region
      $region9: #{multi_head_relative_attention.1} parent=5 // pred_check
        _
      $region10: #{multi_head_relative_attention.1} parent=5 // pred_check_branch
        %214 = sbr.rel (%p211) target = $region12
      $region11: #{multi_head_relative_attention.1} parent=5 // pred_region
        %s215 = ssub.s32 %s23, 1
        // Predicated region
        $region13: #{multi_head_relative_attention.1} parent=11 // pred_check
          %p216 = pneg %p110
        $region14: #{multi_head_relative_attention.1} parent=11 // pred_check_branch
          %218 = sbr.rel (%p216) target = $region16
        $region15: #{multi_head_relative_attention.1} parent=11 // pred_region
          %s220 = ssub.s32 256, 256
          %221 = vsyncadd [#allocation7], %s220
          %s222 = sshll.u32 [#allocation8], 4
          %s223 = int_to_ptr.vmem [resolvable:$true] %s222
          %228 = dma.hbm_to_vmem [thread:$0]  %s2, 256, %s223, [#allocation7], 64, 64, 4
        $region16: #{multi_head_relative_attention.1} parent=11 // pred_fallthru
          _
        // Predicated region
        $region17: #{multi_head_relative_attention.1} parent=11 // pred_check
          %p229 = pneg %p131
        $region18: #{multi_head_relative_attention.1} parent=11 // pred_check_branch
          %231 = sbr.rel (%p229) target = $region20
        $region19: #{multi_head_relative_attention.1} parent=11 // pred_region
          %s233 = ssub.s32 512, 512
          %234 = vsyncadd [#allocation10], %s233
          %s235 = sshll.u32 [#allocation9], 4
          %s236 = int_to_ptr.vmem [resolvable:$true] %s235
          %241 = dma.hbm_to_vmem [thread:$0]  %s3, 512, %s236, [#allocation10], 64, 64, 4
        $region20: #{multi_head_relative_attention.1} parent=11 // pred_fallthru
          _
        // Predicated region
        $region21: #{multi_head_relative_attention.1} parent=11 // pred_check
          %p242 = pneg %p152
        $region22: #{multi_head_relative_attention.1} parent=11 // pred_check_branch
          %244 = sbr.rel (%p242) target = $region24
        $region23: #{multi_head_relative_attention.1} parent=11 // pred_region
          %s246 = ssub.s32 256, 256
          %247 = vsyncadd [#allocation10], %s246
          %s248 = sshll.u32 [#allocation11], 4
          %s249 = int_to_ptr.vmem [resolvable:$true] %s248
          %254 = dma.hbm_to_vmem [thread:$0]  %s4, 256, %s249, [#allocation10], 64, 64, 4
        $region24: #{multi_head_relative_attention.1} parent=11 // pred_fallthru
          _
        // Predicated region
        $region25: #{multi_head_relative_attention.1} parent=11 // pred_check
          %p255 = pneg %p173
        $region26: #{multi_head_relative_attention.1} parent=11 // pred_check_branch
          %257 = sbr.rel (%p255) target = $region28
        $region27: #{multi_head_relative_attention.1} parent=11 // pred_region
          %s259 = ssub.s32 16, 16
          %260 = vsyncadd [#allocation13], %s259
          %s262 = sshll.u32 [#allocation12], 4
          %s263 = int_to_ptr.vmem [resolvable:$true] %s262
          %265 = dma.hbm_to_vmem [thread:$0]  %s5, 16, %s263, [#allocation13]
        $region28: #{multi_head_relative_attention.1} parent=11 // pred_fallthru
          _
      $region12: #{multi_head_relative_attention.1} parent=5 // pred_fallthru
        _
      %p266 = scmp.lt.s32.totalorder %s23, 2
      // Predicated region
      $region29: #{multi_head_relative_attention.1} parent=5 // pred_check
        %p267 = pneg %p266
      $region30: #{multi_head_relative_attention.1} parent=5 // pred_check_branch
        %269 = sbr.rel (%p267) target = $region32
      $region31: #{multi_head_relative_attention.1} parent=5 // pred_region
        // Predicated region
        $region33: #{multi_head_relative_attention.1} parent=31 // pred_check
          %p270 = pneg %p57
        $region34: #{multi_head_relative_attention.1} parent=31 // pred_check_branch
          %272 = sbr.rel (%p270) target = $region36
        $region35: #{multi_head_relative_attention.1} parent=31 // pred_region
          %s273 = sand.u32 %s47, 1
          %s274 = scalar_lea.sflag [#allocation4], %s273
          %s275 = sand.u32 %s47, 1
          %s276 = smul.addr %s275, 4
          %s277 = scalar_lea.vmem [#allocation3], %s276
          %s279 = ssub.s32 64, 64
          %280 = vsyncadd %s274, %s279
          %s281 = sadd.s32 %s31, %s30
          %s282 = smul.addr %s281, 64
          %s283 = scalar_lea.hbm %s0, %s282
          %s285 = sshll.u32 %s277, 4
          %s286 = int_to_ptr.vmem [resolvable:$true] %s285
          %288 = dma.hbm_to_vmem [thread:$0]  %s283, 64, %s286, %s274
        $region36: #{multi_head_relative_attention.1} parent=31 // pred_fallthru
          _
        // Predicated region
        $region37: #{multi_head_relative_attention.1} parent=31 // pred_check
          %p289 = pneg %p83
        $region38: #{multi_head_relative_attention.1} parent=31 // pred_check_branch
          %291 = sbr.rel (%p289) target = $region40
        $region39: #{multi_head_relative_attention.1} parent=31 // pred_region
          %s292 = sand.u32 %s23, 1
          %s293 = scalar_lea.sflag [#allocation7], %s292
          %s294 = sand.u32 %s73, 1
          %s295 = smul.addr %s294, 4
          %s296 = scalar_lea.vmem [#allocation6], %s295
          %s298 = ssub.s32 64, 64
          %299 = vsyncadd %s293, %s298
          %s300 = smul.addr %s30, 64
          %s301 = scalar_lea.hbm %s1, %s300
          %s303 = sshll.u32 %s296, 4
          %s304 = int_to_ptr.vmem [resolvable:$true] %s303
          %306 = dma.hbm_to_vmem [thread:$0]  %s301, 64, %s304, %s293
        $region40: #{multi_head_relative_attention.1} parent=31 // pred_fallthru
          _
      $region32: #{multi_head_relative_attention.1} parent=5 // pred_fallthru
        _
      %p307 = scmp.le.s32.totalorder 1, %s23
      %p308 = scmp.lt.s32.totalorder %s23, 3
      %p309 = pnand %p307, %p308
      %p310 = pneg %p309
      // Predicated region
      $region41: #{multi_head_relative_attention.1} parent=5 // pred_check
        _
      $region42: #{multi_head_relative_attention.1} parent=5 // pred_check_branch
        %312 = sbr.rel (%p309) target = $region44
      $region43: #{multi_head_relative_attention.1} parent=5 // pred_region
        %s313 = ssub.s32 %s23, 1
        %s314 = sand.u32 %s50, 1
        %s315 = scalar_lea.sflag [#allocation4], %s314
        %s316 = sand.u32 %s50, 1
        %s317 = smul.addr %s316, 4
        %s318 = scalar_lea.vmem [#allocation3], %s317
        // Predicated region
        $region45: #{multi_head_relative_attention.1} parent=43 // pred_check
          %p319 = pneg %p63
        $region46: #{multi_head_relative_attention.1} parent=43 // pred_check_branch
          %321 = sbr.rel (%p319) target = $region48
        $region47: #{multi_head_relative_attention.1} parent=43 // pred_region
          %322 = dma.done %s315, 64
        $region48: #{multi_head_relative_attention.1} parent=43 // pred_fallthru
          _
        %s323 = sand.u32 %s28, 1
        %s324 = scalar_lea.sflag [#allocation7], %s323
        %s325 = sand.u32 %s76, 1
        %s326 = smul.addr %s325, 4
        %s327 = scalar_lea.vmem [#allocation6], %s326
        // Predicated region
        $region49: #{multi_head_relative_attention.1} parent=43 // pred_check
          %p328 = pneg %p89
        $region50: #{multi_head_relative_attention.1} parent=43 // pred_check_branch
          %330 = sbr.rel (%p328) target = $region52
        $region51: #{multi_head_relative_attention.1} parent=43 // pred_region
          %331 = dma.done %s324, 64
        $region52: #{multi_head_relative_attention.1} parent=43 // pred_fallthru
          _
        // Predicated region
        $region53: #{multi_head_relative_attention.1} parent=43 // pred_check
          %p332 = pneg %p110
        $region54: #{multi_head_relative_attention.1} parent=43 // pred_check_branch
          %334 = sbr.rel (%p332) target = $region56
        $region55: #{multi_head_relative_attention.1} parent=43 // pred_region
          %335 = dma.done [#allocation7], 256
        $region56: #{multi_head_relative_attention.1} parent=43 // pred_fallthru
          _
        // Predicated region
        $region57: #{multi_head_relative_attention.1} parent=43 // pred_check
          %p336 = pneg %p131
        $region58: #{multi_head_relative_attention.1} parent=43 // pred_check_branch
          %338 = sbr.rel (%p336) target = $region60
        $region59: #{multi_head_relative_attention.1} parent=43 // pred_region
          %339 = dma.done [#allocation10], 512
        $region60: #{multi_head_relative_attention.1} parent=43 // pred_fallthru
          _
        // Predicated region
        $region61: #{multi_head_relative_attention.1} parent=43 // pred_check
          %p340 = pneg %p152
        $region62: #{multi_head_relative_attention.1} parent=43 // pred_check_branch
          %342 = sbr.rel (%p340) target = $region64
        $region63: #{multi_head_relative_attention.1} parent=43 // pred_region
          %343 = dma.done [#allocation10], 256
        $region64: #{multi_head_relative_attention.1} parent=43 // pred_fallthru
          _
        // Predicated region
        $region65: #{multi_head_relative_attention.1} parent=43 // pred_check
          %p344 = pneg %p173
        $region66: #{multi_head_relative_attention.1} parent=43 // pred_check_branch
          %346 = sbr.rel (%p344) target = $region68
        $region67: #{multi_head_relative_attention.1} parent=43 // pred_region
          %347 = dma.done [#allocation13], 16
        $region68: #{multi_head_relative_attention.1} parent=43 // pred_fallthru
          _
        %s348 = sand.u32 %s50, 1
        %s349 = scalar_lea.sflag [#allocation4], %s348
        %s350 = sand.u32 %s50, 1
        %s351 = smul.addr %s350, 4
        %s352 = scalar_lea.vmem [#allocation3], %s351
        %p353 = pneg %p63
        %p354 = pneg %p60
        %s355 = sand.u32 %s28, 1
        %s356 = scalar_lea.sflag [#allocation7], %s355
        %s357 = sand.u32 %s76, 1
        %s358 = smul.addr %s357, 4
        %s359 = scalar_lea.vmem [#allocation6], %s358
        %p360 = pneg %p89
        %p361 = pneg %p86
        %p362 = pneg %p110
        %p363 = pneg %p107
        %p364 = pneg %p131
        %p365 = pneg %p128
        %p366 = pneg %p152
        %p367 = pneg %p149
        %p368 = pneg %p173
        %p369 = pneg %p170
        %p370 = pneg %p201
        %p371 = pneg %p198
        %s372 = sand.u32 %s188, 1
        %s373 = scalar_lea.sflag [#allocation5], %s372
        %s374 = sand.u32 %s188, 1
        %s375 = smul.addr %s374, 8
        %s376 = scalar_lea.vmem [#allocation14], %s375
        %s378 = smul.u32 %s33, 8
        %v379 = vld [vmem:[%s318] sm:$0xf]
        %v380 = vld [vmem:[#allocation8] sm:$0xf]
        %v381 = vld [vmem:[#allocation8 + $0x4] sm:$0xf]
        %v382 = vld [vmem:[#allocation8 + $0x8] sm:$0xf]
        %v383 = vld [vmem:[#allocation8 + $0xc] sm:$0xf]
        %v388 = vunpack.c.l.b16 %v380
        %v389 = vunpack.c.l.b16 %v381
        %v390 = vunpack.c.l.b16 %v382
        %v391 = vunpack.c.l.b16 %v383
        %v392 = vpack.c.b16 %v389, %v388
        %v393 = vpack.c.b16 %v391, %v390
        %vm396 = vcmask 261120
        %v398 = vsel %vm396, %v379, 0
        %400 = vmatprep.subr.bf16.mxu0 0
        %401 = vmatpush1.bf16.msra.mxu0 %v392
        %402 = vmatprep.subr.bf16.mxu0 0
        %403 = vmatpush1.bf16.msra.mxu0 %v393
        %404 = vmatprep.subr.bf16.mxu0 0
        %405 = vmatpush1.bf16.msra.mxu0 0
        %406 = vmatprep.subr.bf16.mxu0 0
        %407 = vmatpush1.bf16.msra.mxu0 0
        %408 = vmatprep.subr.bf16.mxu0 0
        %409 = vmatpush1.bf16.msra.mxu0 0
        %410 = vmatprep.subr.bf16.mxu0 0
        %411 = vmatpush1.bf16.msra.mxu0 0
        %412 = vmatprep.subr.bf16.mxu0 0
        %413 = vmatpush1.bf16.msra.mxu0 0
        %414 = vmatprep.subr.bf16.mxu0 0
        %415 = vmatpush1.bf16.msra.mxu0 0
        %416 = vmatprep.subr.bf16.mxu0 0
        %417 = vmatpush1.bf16.msra.mxu0 0
        %418 = vmatprep.subr.bf16.mxu0 0
        %419 = vmatpush1.bf16.msra.mxu0 0
        %420 = vmatprep.subr.bf16.mxu0 0
        %421 = vmatpush1.bf16.msra.mxu0 0
        %422 = vmatprep.subr.bf16.mxu0 0
        %423 = vmatpush1.bf16.msra.mxu0 0
        %424 = vmatprep.subr.bf16.mxu0 0
        %425 = vmatpush1.bf16.msra.mxu0 0
        %426 = vmatprep.subr.bf16.mxu0 0
        %427 = vmatpush1.bf16.msra.mxu0 0
        %428 = vmatprep.subr.bf16.mxu0 0
        %429 = vmatpush1.bf16.msra.mxu0 0
        %430 = vmatprep.subr.bf16.mxu0 0
        %431 = vmatpush1.bf16.msra.mxu0 0
        %432 = vmatprep.mubr.bf16.mxu0 0
        %433 = vmatmul.mubr.bf16.gmra.mrb[0].mxu0 %v398
        %v434 = vpop.f32.mrb[0].mxu0
        %v435 = vadd.f32 0.0, %v434
        %v436 = vpop.f32.mrb[0].mxu0
        %v437 = vpop.f32.mrb[0].mxu0
        %v438 = vpop.f32.mrb[0].mxu0
        %439 = vdwg.mxu0
        %v440 = vpack.c.bf16 %v435, %v435
        %v441 = vlaneseq
        %v442 = vshrl.u32 %v441, 7
        %v443 = vstv %s378
        %v444 = vadd.s32 %v443, %v442
        %v445 = vlaneseq
        %v446 = vand.u32 %v445, 127
        %vm447 = vcmp.le.s32.totalorder %v446, %v444
        %v448 = vld [vmem:[%s327] sm:$0xf]
        %v449 = vld [vmem:[#allocation9] sm:$0xf]
        %v450 = vld [vmem:[#allocation9 + $0x4] sm:$0xf]
        %v453 = vunpack.c.l.b16 %v449
        %v454 = vunpack.c.l.b16 %v450
        %v455 = vpack.c.b16 %v454, %v453
        %vm456 = vcmask 64512
        %v458 = vsel %vm456, %v440, 0
        %v461 = vsel %vm456, %v455, 0
        %463 = vmatprep.subr.bf16.mxu0 0
        %464 = vmatpush1.bf16.xpose.msra.mxu0 %v461
        %465 = vmatprep.subr.bf16.mxu0 0
        %466 = vmatpush1.bf16.xpose.msra.mxu0 0
        %467 = vmatprep.subr.bf16.mxu0 0
        %468 = vmatpush1.bf16.xpose.msra.mxu0 0
        %469 = vmatprep.subr.bf16.mxu0 0
        %470 = vmatpush1.bf16.xpose.msra.mxu0 0
        %471 = vmatprep.subr.bf16.mxu0 0
        %472 = vmatpush1.bf16.xpose.msra.mxu0 0
        %473 = vmatprep.subr.bf16.mxu0 0
        %474 = vmatpush1.bf16.xpose.msra.mxu0 0
        %475 = vmatprep.subr.bf16.mxu0 0
        %476 = vmatpush1.bf16.xpose.msra.mxu0 0
        %477 = vmatprep.subr.bf16.mxu0 0
        %478 = vmatpush1.bf16.xpose.msra.mxu0 0
        %479 = vmatprep.subr.bf16.mxu0 0
        %480 = vmatpush1.bf16.xpose.msra.mxu0 0
        %481 = vmatprep.subr.bf16.mxu0 0
        %482 = vmatpush1.bf16.xpose.msra.mxu0 0
        %483 = vmatprep.subr.bf16.mxu0 0
        %484 = vmatpush1.bf16.xpose.msra.mxu0 0
        %485 = vmatprep.subr.bf16.mxu0 0
        %486 = vmatpush1.bf16.xpose.msra.mxu0 0
        %487 = vmatprep.subr.bf16.mxu0 0
        %488 = vmatpush1.bf16.xpose.msra.mxu0 0
        %489 = vmatprep.subr.bf16.mxu0 0
        %490 = vmatpush1.bf16.xpose.msra.mxu0 0
        %491 = vmatprep.subr.bf16.mxu0 0
        %492 = vmatpush1.bf16.xpose.msra.mxu0 0
        %493 = vmatprep.subr.bf16.mxu0 0
        %494 = vmatpush1.bf16.xpose.msra.mxu0 0
        %495 = vmatprep.mubr.bf16.mxu0 0
        %496 = vmatmul.mubr.bf16.gmra.mrb[0].mxu0 %v458
        %v497 = vpop.f32.mrb[0].mxu0
        %v498 = vadd.f32 0.0, %v497
        %v499 = vpop.f32.mrb[0].mxu0
        %v500 = vpop.f32.mrb[0].mxu0
        %v501 = vpop.f32.mrb[0].mxu0
        %502 = vdwg.mxu0
        %s503 = ssub.s32 7, %s378
        %v504 = vstv %s503
        %v505 = vsub.s32 %v504, %v442
        %vm506 = vcmp.ge.s32.totalorder %v505, 4
        %v507 = vsub.s32 %v505, 4
        %v508 = vsel %vm506, %v507, %v505
        %v509 = vsel %vm506, 1, 0
        %vm510 = vcmp.eq.s32.totalorder %v509, 1
        %512 = vrot.lane.b32.xlu0 %v498, 4
        %v513 = vpop.permute.xlu0 %512
        %v515 = vsel %vm510, %v498, %v513
        %vm516 = vcmp.ge.s32.totalorder %v508, 2
        %v517 = vsub.s32 %v508, 2
        %v518 = vsel %vm516, %v517, %v508
        %v519 = vsel %vm516, 1, 0
        %vm520 = vcmp.eq.s32.totalorder %v519, 1
        %522 = vrot.lane.b32.xlu0 %v515, 2
        %v523 = vpop.permute.xlu0 %522
        %v525 = vsel %vm520, %v515, %v523
        %vm526 = vcmp.ge.s32.totalorder %v518, 1
        %v527 = vsel %vm526, 1, 0
        %vm528 = vcmp.eq.s32.totalorder %v527, 1
        %530 = vrot.lane.b32.xlu0 %v525, 1
        %v531 = vpop.permute.xlu0 %530
        %v533 = vsel %vm528, %v525, %v531
        %535 = vrot.lane.b32.xlu0 %v533, 121
        %v536 = vpop.permute.xlu0 %535
        %v539 = vsel %vm456, %v448, 0
        %541 = vmatprep.subr.bf16.mxu0 0
        %542 = vmatpush1.bf16.xpose.msra.mxu0 %v539
        %543 = vmatprep.subr.bf16.mxu0 0
        %544 = vmatpush1.bf16.xpose.msra.mxu0 0
        %545 = vmatprep.subr.bf16.mxu0 0
        %546 = vmatpush1.bf16.xpose.msra.mxu0 0
        %547 = vmatprep.subr.bf16.mxu0 0
        %548 = vmatpush1.bf16.xpose.msra.mxu0 0
        %549 = vmatprep.subr.bf16.mxu0 0
        %550 = vmatpush1.bf16.xpose.msra.mxu0 0
        %551 = vmatprep.subr.bf16.mxu0 0
        %552 = vmatpush1.bf16.xpose.msra.mxu0 0
        %553 = vmatprep.subr.bf16.mxu0 0
        %554 = vmatpush1.bf16.xpose.msra.mxu0 0
        %555 = vmatprep.subr.bf16.mxu0 0
        %556 = vmatpush1.bf16.xpose.msra.mxu0 0
        %557 = vmatprep.subr.bf16.mxu0 0
        %558 = vmatpush1.bf16.xpose.msra.mxu0 0
        %559 = vmatprep.subr.bf16.mxu0 0
        %560 = vmatpush1.bf16.xpose.msra.mxu0 0
        %561 = vmatprep.subr.bf16.mxu0 0
        %562 = vmatpush1.bf16.xpose.msra.mxu0 0
        %563 = vmatprep.subr.bf16.mxu0 0
        %564 = vmatpush1.bf16.xpose.msra.mxu0 0
        %565 = vmatprep.subr.bf16.mxu0 0
        %566 = vmatpush1.bf16.xpose.msra.mxu0 0
        %567 = vmatprep.subr.bf16.mxu0 0
        %568 = vmatpush1.bf16.xpose.msra.mxu0 0
        %569 = vmatprep.subr.bf16.mxu0 0
        %570 = vmatpush1.bf16.xpose.msra.mxu0 0
        %571 = vmatprep.subr.bf16.mxu0 0
        %572 = vmatpush1.bf16.xpose.msra.mxu0 0
        %573 = vmatprep.mubr.bf16.mxu0 0
        %574 = vmatmul.mubr.bf16.gmra.mrb[0].mxu0 %v458
        %v575 = vpop.f32.mrb[0].mxu0
        %v576 = vadd.f32 %v536, %v575
        %v577 = vpop.f32.mrb[0].mxu0
        %v578 = vpop.f32.mrb[0].mxu0
        %v579 = vpop.f32.mrb[0].mxu0
        %580 = vdwg.mxu0
        %v581 = vsel %vm447, %v576, -1e+30
        %v582 = vsel %vm456, %v581, -inf
        %583 = vmax.xlane.f32.xlu0 %v582
        %v584 = vpop.xlane.xlu0 %583
        %v585 = vsub.f32 %v581, %v584
        %v586 = vmul.f32 %v585, 1.442695
        %v587 = vpow.pop %v586
        %v588 = vsel %vm456, %v587, 0.0
        %589 = vadd.xlane.f32.xlu0 %v588
        %v590 = vpop.xlane.xlu0 %589
        %v591 = vrcp.pop %v590
        %v592 = vmul.f32 %v587, %v591
        %v593 = vpack.c.bf16 %v592, %v592
        %v595 = vunpack.c.l.b16 %v448
        %v596 = vpack.c.b16 %v595, %v595
        %597 = vrot.lane.b32.xlu0 %v596, 96
        %v598 = vpop.permute.xlu0 %597
        %v600 = vsel %vm456, %v593, 0
        %vm602 = vcmask 1043456
        %v604 = vsel %vm602, %v598, 0
        %606 = vmatprep.subr.bf16.mxu0 0
        %607 = vmatpush1.bf16.msra.mxu0 %v604
        %608 = vmatprep.subr.bf16.mxu0 0
        %609 = vmatpush1.bf16.msra.mxu0 0
        %610 = vmatprep.subr.bf16.mxu0 0
        %611 = vmatpush1.bf16.msra.mxu0 0
        %612 = vmatprep.subr.bf16.mxu0 0
        %613 = vmatpush1.bf16.msra.mxu0 0
        %614 = vmatprep.subr.bf16.mxu0 0
        %615 = vmatpush1.bf16.msra.mxu0 0
        %616 = vmatprep.subr.bf16.mxu0 0
        %617 = vmatpush1.bf16.msra.mxu0 0
        %618 = vmatprep.subr.bf16.mxu0 0
        %619 = vmatpush1.bf16.msra.mxu0 0
        %620 = vmatprep.subr.bf16.mxu0 0
        %621 = vmatpush1.bf16.msra.mxu0 0
        %622 = vmatprep.subr.bf16.mxu0 0
        %623 = vmatpush1.bf16.msra.mxu0 0
        %624 = vmatprep.subr.bf16.mxu0 0
        %625 = vmatpush1.bf16.msra.mxu0 0
        %626 = vmatprep.subr.bf16.mxu0 0
        %627 = vmatpush1.bf16.msra.mxu0 0
        %628 = vmatprep.subr.bf16.mxu0 0
        %629 = vmatpush1.bf16.msra.mxu0 0
        %630 = vmatprep.subr.bf16.mxu0 0
        %631 = vmatpush1.bf16.msra.mxu0 0
        %632 = vmatprep.subr.bf16.mxu0 0
        %633 = vmatpush1.bf16.msra.mxu0 0
        %634 = vmatprep.subr.bf16.mxu0 0
        %635 = vmatpush1.bf16.msra.mxu0 0
        %636 = vmatprep.subr.bf16.mxu0 0
        %637 = vmatpush1.bf16.msra.mxu0 0
        %638 = vmatprep.mubr.bf16.mxu0 0
        %639 = vmatmul.mubr.bf16.gmra.mrb[0].mxu0 %v600
        %v640 = vpop.f32.mrb[0].mxu0
        %v641 = vadd.f32 0.0, %v640
        %v642 = vpop.f32.mrb[0].mxu0
        %v643 = vpop.f32.mrb[0].mxu0
        %v644 = vpop.f32.mrb[0].mxu0
        %645 = vdwg.mxu0
        %v646 = vpack.c.bf16 %v641, %v641
        %vm647 = vcmask 60416
        %648 = vst.msk [vmem:[#allocation2] sm:$0xf] %vm647, %v646
        %v649 = vld [vmem:[%s327] sm:$0xf]
        %s650 = scalar_lea.vmem [#allocation9], 8
        %v651 = vld [vmem:[%s650] sm:$0xf]
        %v652 = vld [vmem:[%s650 + $0x4] sm:$0xf]
        %654 = vrot.lane.b32.xlu0 %v440, 120
        %v655 = vpop.permute.xlu0 %654
        %v658 = vunpack.c.l.b16 %v651
        %v659 = vunpack.c.l.b16 %v652
        %v660 = vpack.c.b16 %v659, %v658
        %v662 = vsel %vm456, %v655, 0
        %v665 = vsel %vm456, %v660, 0
        %667 = vmatprep.subr.bf16.mxu0 0
        %668 = vmatpush1.bf16.xpose.msra.mxu0 %v665
        %669 = vmatprep.subr.bf16.mxu0 0
        %670 = vmatpush1.bf16.xpose.msra.mxu0 0
        %671 = vmatprep.subr.bf16.mxu0 0
        %672 = vmatpush1.bf16.xpose.msra.mxu0 0
        %673 = vmatprep.subr.bf16.mxu0 0
        %674 = vmatpush1.bf16.xpose.msra.mxu0 0
        %675 = vmatprep.subr.bf16.mxu0 0
        %676 = vmatpush1.bf16.xpose.msra.mxu0 0
        %677 = vmatprep.subr.bf16.mxu0 0
        %678 = vmatpush1.bf16.xpose.msra.mxu0 0
        %679 = vmatprep.subr.bf16.mxu0 0
        %680 = vmatpush1.bf16.xpose.msra.mxu0 0
        %681 = vmatprep.subr.bf16.mxu0 0
        %682 = vmatpush1.bf16.xpose.msra.mxu0 0
        %683 = vmatprep.subr.bf16.mxu0 0
        %684 = vmatpush1.bf16.xpose.msra.mxu0 0
        %685 = vmatprep.subr.bf16.mxu0 0
        %686 = vmatpush1.bf16.xpose.msra.mxu0 0
        %687 = vmatprep.subr.bf16.mxu0 0
        %688 = vmatpush1.bf16.xpose.msra.mxu0 0
        %689 = vmatprep.subr.bf16.mxu0 0
        %690 = vmatpush1.bf16.xpose.msra.mxu0 0
        %691 = vmatprep.subr.bf16.mxu0 0
        %692 = vmatpush1.bf16.xpose.msra.mxu0 0
        %693 = vmatprep.subr.bf16.mxu0 0
        %694 = vmatpush1.bf16.xpose.msra.mxu0 0
        %695 = vmatprep.subr.bf16.mxu0 0
        %696 = vmatpush1.bf16.xpose.msra.mxu0 0
        %697 = vmatprep.subr.bf16.mxu0 0
        %698 = vmatpush1.bf16.xpose.msra.mxu0 0
        %699 = vmatprep.mubr.bf16.mxu0 0
        %700 = vmatmul.mubr.bf16.gmra.mrb[0].mxu0 %v662
        %v701 = vpop.f32.mrb[0].mxu0
        %v702 = vadd.f32 0.0, %v701
        %v703 = vpop.f32.mrb[0].mxu0
        %v704 = vpop.f32.mrb[0].mxu0
        %v705 = vpop.f32.mrb[0].mxu0
        %706 = vdwg.mxu0
        %708 = vrot.lane.b32.xlu0 %v702, 4
        %v709 = vpop.permute.xlu0 %708
        %v711 = vsel %vm510, %v702, %v709
        %713 = vrot.lane.b32.xlu0 %v711, 2
        %v714 = vpop.permute.xlu0 %713
        %v716 = vsel %vm520, %v711, %v714
        %718 = vrot.lane.b32.xlu0 %v716, 1
        %v719 = vpop.permute.xlu0 %718
        %v721 = vsel %vm528, %v716, %v719
        %v723 = vunpack.c.l.b16 %v649
        %v724 = vpack.c.b16 %v723, %v723
        %725 = vrot.lane.b32.xlu0 %v724, 120
        %v726 = vpop.permute.xlu0 %725
        %728 = vrot.lane.b32.xlu0 %v721, 121
        %v729 = vpop.permute.xlu0 %728
        %v732 = vsel %vm456, %v726, 0
        %734 = vmatprep.subr.bf16.mxu0 0
        %735 = vmatpush1.bf16.xpose.msra.mxu0 %v732
        %736 = vmatprep.subr.bf16.mxu0 0
        %737 = vmatpush1.bf16.xpose.msra.mxu0 0
        %738 = vmatprep.subr.bf16.mxu0 0
        %739 = vmatpush1.bf16.xpose.msra.mxu0 0
        %740 = vmatprep.subr.bf16.mxu0 0
        %741 = vmatpush1.bf16.xpose.msra.mxu0 0
        %742 = vmatprep.subr.bf16.mxu0 0
        %743 = vmatpush1.bf16.xpose.msra.mxu0 0
        %744 = vmatprep.subr.bf16.mxu0 0
        %745 = vmatpush1.bf16.xpose.msra.mxu0 0
        %746 = vmatprep.subr.bf16.mxu0 0
        %747 = vmatpush1.bf16.xpose.msra.mxu0 0
        %748 = vmatprep.subr.bf16.mxu0 0
        %749 = vmatpush1.bf16.xpose.msra.mxu0 0
        %750 = vmatprep.subr.bf16.mxu0 0
        %751 = vmatpush1.bf16.xpose.msra.mxu0 0
        %752 = vmatprep.subr.bf16.mxu0 0
        %753 = vmatpush1.bf16.xpose.msra.mxu0 0
        %754 = vmatprep.subr.bf16.mxu0 0
        %755 = vmatpush1.bf16.xpose.msra.mxu0 0
        %756 = vmatprep.subr.bf16.mxu0 0
        %757 = vmatpush1.bf16.xpose.msra.mxu0 0
        %758 = vmatprep.subr.bf16.mxu0 0
        %759 = vmatpush1.bf16.xpose.msra.mxu0 0
        %760 = vmatprep.subr.bf16.mxu0 0
        %761 = vmatpush1.bf16.xpose.msra.mxu0 0
        %762 = vmatprep.subr.bf16.mxu0 0
        %763 = vmatpush1.bf16.xpose.msra.mxu0 0
        %764 = vmatprep.subr.bf16.mxu0 0
        %765 = vmatpush1.bf16.xpose.msra.mxu0 0
        %766 = vmatprep.mubr.bf16.mxu0 0
        %767 = vmatmul.mubr.bf16.gmra.mrb[0].mxu0 %v662
        %v768 = vpop.f32.mrb[0].mxu0
        %v769 = vadd.f32 %v729, %v768
        %v770 = vpop.f32.mrb[0].mxu0
        %v771 = vpop.f32.mrb[0].mxu0
        %v772 = vpop.f32.mrb[0].mxu0
        %773 = vdwg.mxu0
        %v774 = vsel %vm447, %v769, -1e+30
        %v775 = vsel %vm456, %v774, -inf
        %776 = vmax.xlane.f32.xlu0 %v775
        %v777 = vpop.xlane.xlu0 %776
        %v778 = vsub.f32 %v774, %v777
        %v779 = vmul.f32 %v778, 1.442695
        %v780 = vpow.pop %v779
        %v781 = vsel %vm456, %v780, 0.0
        %782 = vadd.xlane.f32.xlu0 %v781
        %v783 = vpop.xlane.xlu0 %782
        %v784 = vrcp.pop %v783
        %v785 = vmul.f32 %v780, %v784
        %v786 = vpack.c.bf16 %v785, %v785
        %787 = vrot.lane.b32.xlu0 %v724, 88
        %v788 = vpop.permute.xlu0 %787
        %v790 = vsel %vm456, %v786, 0
        %v793 = vsel %vm602, %v788, 0
        %795 = vmatprep.subr.bf16.mxu0 0
        %796 = vmatpush1.bf16.msra.mxu0 %v793
        %797 = vmatprep.subr.bf16.mxu0 0
        %798 = vmatpush1.bf16.msra.mxu0 0
        %799 = vmatprep.subr.bf16.mxu0 0
        %800 = vmatpush1.bf16.msra.mxu0 0
        %801 = vmatprep.subr.bf16.mxu0 0
        %802 = vmatpush1.bf16.msra.mxu0 0
        %803 = vmatprep.subr.bf16.mxu0 0
        %804 = vmatpush1.bf16.msra.mxu0 0
        %805 = vmatprep.subr.bf16.mxu0 0
        %806 = vmatpush1.bf16.msra.mxu0 0
        %807 = vmatprep.subr.bf16.mxu0 0
        %808 = vmatpush1.bf16.msra.mxu0 0
        %809 = vmatprep.subr.bf16.mxu0 0
        %810 = vmatpush1.bf16.msra.mxu0 0
        %811 = vmatprep.subr.bf16.mxu0 0
        %812 = vmatpush1.bf16.msra.mxu0 0
        %813 = vmatprep.subr.bf16.mxu0 0
        %814 = vmatpush1.bf16.msra.mxu0 0
        %815 = vmatprep.subr.bf16.mxu0 0
        %816 = vmatpush1.bf16.msra.mxu0 0
        %817 = vmatprep.subr.bf16.mxu0 0
        %818 = vmatpush1.bf16.msra.mxu0 0
        %819 = vmatprep.subr.bf16.mxu0 0
        %820 = vmatpush1.bf16.msra.mxu0 0
        %821 = vmatprep.subr.bf16.mxu0 0
        %822 = vmatpush1.bf16.msra.mxu0 0
        %823 = vmatprep.subr.bf16.mxu0 0
        %824 = vmatpush1.bf16.msra.mxu0 0
        %825 = vmatprep.subr.bf16.mxu0 0
        %826 = vmatpush1.bf16.msra.mxu0 0
        %827 = vmatprep.mubr.bf16.mxu0 0
        %828 = vmatmul.mubr.bf16.gmra.mrb[0].mxu0 %v790
        %v829 = vpop.f32.mrb[0].mxu0
        %v830 = vadd.f32 0.0, %v829
        %v831 = vpop.f32.mrb[0].mxu0
        %v832 = vpop.f32.mrb[0].mxu0
        %v833 = vpop.f32.mrb[0].mxu0
        %834 = vdwg.mxu0
        %v835 = vpack.c.bf16 %v830, %v830
        %v837 = vunpack.c.l.b16 %v835
        %v838 = vpack.c.b16 %v837, %v837
        %839 = vrot.lane.b32.xlu0 %v838, 8
        %v840 = vpop.permute.xlu0 %839
        %vm842 = vcmask 126016
        %843 = vst.msk [vmem:[#allocation2] sm:$0xf] %vm842, %v840
        %v844 = vld [vmem:[%s327] sm:$0xf]
        %s845 = scalar_lea.vmem [#allocation9], 16
        %v846 = vld [vmem:[%s845] sm:$0xf]
        %v847 = vld [vmem:[%s845 + $0x4] sm:$0xf]
        %848 = vrot.lane.b32.xlu0 %v440, 112
        %v849 = vpop.permute.xlu0 %848
        %v852 = vunpack.c.l.b16 %v846
        %v853 = vunpack.c.l.b16 %v847
        %v854 = vpack.c.b16 %v853, %v852
        %v856 = vsel %vm456, %v849, 0
        %v859 = vsel %vm456, %v854, 0
        %861 = vmatprep.subr.bf16.mxu0 0
        %862 = vmatpush1.bf16.xpose.msra.mxu0 %v859
        %863 = vmatprep.subr.bf16.mxu0 0
        %864 = vmatpush1.bf16.xpose.msra.mxu0 0
        %865 = vmatprep.subr.bf16.mxu0 0
        %866 = vmatpush1.bf16.xpose.msra.mxu0 0
        %867 = vmatprep.subr.bf16.mxu0 0
        %868 = vmatpush1.bf16.xpose.msra.mxu0 0
        %869 = vmatprep.subr.bf16.mxu0 0
        %870 = vmatpush1.bf16.xpose.msra.mxu0 0
        %871 = vmatprep.subr.bf16.mxu0 0
        %872 = vmatpush1.bf16.xpose.msra.mxu0 0
        %873 = vmatprep.subr.bf16.mxu0 0
        %874 = vmatpush1.bf16.xpose.msra.mxu0 0
        %875 = vmatprep.subr.bf16.mxu0 0
        %876 = vmatpush1.bf16.xpose.msra.mxu0 0
        %877 = vmatprep.subr.bf16.mxu0 0
        %878 = vmatpush1.bf16.xpose.msra.mxu0 0
        %879 = vmatprep.subr.bf16.mxu0 0
        %880 = vmatpush1.bf16.xpose.msra.mxu0 0
        %881 = vmatprep.subr.bf16.mxu0 0
        %882 = vmatpush1.bf16.xpose.msra.mxu0 0
        %883 = vmatprep.subr.bf16.mxu0 0
        %884 = vmatpush1.bf16.xpose.msra.mxu0 0
        %885 = vmatprep.subr.bf16.mxu0 0
        %886 = vmatpush1.bf16.xpose.msra.mxu0 0
        %887 = vmatprep.subr.bf16.mxu0 0
        %888 = vmatpush1.bf16.xpose.msra.mxu0 0
        %889 = vmatprep.subr.bf16.mxu0 0
        %890 = vmatpush1.bf16.xpose.msra.mxu0 0
        %891 = vmatprep.subr.bf16.mxu0 0
        %892 = vmatpush1.bf16.xpose.msra.mxu0 0
        %893 = vmatprep.mubr.bf16.mxu0 0
        %894 = vmatmul.mubr.bf16.gmra.mrb[0].mxu0 %v856
        %v895 = vpop.f32.mrb[0].mxu0
        %v896 = vadd.f32 0.0, %v895
        %v897 = vpop.f32.mrb[0].mxu0
        %v898 = vpop.f32.mrb[0].mxu0
        %v899 = vpop.f32.mrb[0].mxu0
        %900 = vdwg.mxu0
        %902 = vrot.lane.b32.xlu0 %v896, 4
        %v903 = vpop.permute.xlu0 %902
        %v905 = vsel %vm510, %v896, %v903
        %907 = vrot.lane.b32.xlu0 %v905, 2
        %v908 = vpop.permute.xlu0 %907
        %v910 = vsel %vm520, %v905, %v908
        %912 = vrot.lane.b32.xlu0 %v910, 1
        %v913 = vpop.permute.xlu0 %912
        %v915 = vsel %vm528, %v910, %v913
        %v917 = vunpack.c.l.b16 %v844
        %v918 = vpack.c.b16 %v917, %v917
        %919 = vrot.lane.b32.xlu0 %v918, 112
        %v920 = vpop.permute.xlu0 %919
        %922 = vrot.lane.b32.xlu0 %v915, 121
        %v923 = vpop.permute.xlu0 %922
        %v926 = vsel %vm456, %v920, 0
        %928 = vmatprep.subr.bf16.mxu0 0
        %929 = vmatpush1.bf16.xpose.msra.mxu0 %v926
        %930 = vmatprep.subr.bf16.mxu0 0
        %931 = vmatpush1.bf16.xpose.msra.mxu0 0
        %932 = vmatprep.subr.bf16.mxu0 0
        %933 = vmatpush1.bf16.xpose.msra.mxu0 0
        %934 = vmatprep.subr.bf16.mxu0 0
        %935 = vmatpush1.bf16.xpose.msra.mxu0 0
        %936 = vmatprep.subr.bf16.mxu0 0
        %937 = vmatpush1.bf16.xpose.msra.mxu0 0
        %938 = vmatprep.subr.bf16.mxu0 0
        %939 = vmatpush1.bf16.xpose.msra.mxu0 0
        %940 = vmatprep.subr.bf16.mxu0 0
        %941 = vmatpush1.bf16.xpose.msra.mxu0 0
        %942 = vmatprep.subr.bf16.mxu0 0
        %943 = vmatpush1.bf16.xpose.msra.mxu0 0
        %944 = vmatprep.subr.bf16.mxu0 0
        %945 = vmatpush1.bf16.xpose.msra.mxu0 0
        %946 = vmatprep.subr.bf16.mxu0 0
        %947 = vmatpush1.bf16.xpose.msra.mxu0 0
        %948 = vmatprep.subr.bf16.mxu0 0
        %949 = vmatpush1.bf16.xpose.msra.mxu0 0
        %950 = vmatprep.subr.bf16.mxu0 0
        %951 = vmatpush1.bf16.xpose.msra.mxu0 0
        %952 = vmatprep.subr.bf16.mxu0 0
        %953 = vmatpush1.bf16.xpose.msra.mxu0 0
        %954 = vmatprep.subr.bf16.mxu0 0
        %955 = vmatpush1.bf16.xpose.msra.mxu0 0
        %956 = vmatprep.subr.bf16.mxu0 0
        %957 = vmatpush1.bf16.xpose.msra.mxu0 0
        %958 = vmatprep.subr.bf16.mxu0 0
        %959 = vmatpush1.bf16.xpose.msra.mxu0 0
        %960 = vmatprep.mubr.bf16.mxu0 0
        %961 = vmatmul.mubr.bf16.gmra.mrb[0].mxu0 %v856
        %v962 = vpop.f32.mrb[0].mxu0
        %v963 = vadd.f32 %v923, %v962
        %v964 = vpop.f32.mrb[0].mxu0
        %v965 = vpop.f32.mrb[0].mxu0
        %v966 = vpop.f32.mrb[0].mxu0
        %967 = vdwg.mxu0
        %v968 = vsel %vm447, %v963, -1e+30
        %v969 = vsel %vm456, %v968, -inf
        %970 = vmax.xlane.f32.xlu0 %v969
        %v971 = vpop.xlane.xlu0 %970
        %v972 = vsub.f32 %v968, %v971
        %v973 = vmul.f32 %v972, 1.442695
        %v974 = vpow.pop %v973
        %v975 = vsel %vm456, %v974, 0.0
        %976 = vadd.xlane.f32.xlu0 %v975
        %v977 = vpop.xlane.xlu0 %976
        %v978 = vrcp.pop %v977
        %v979 = vmul.f32 %v974, %v978
        %v980 = vpack.c.bf16 %v979, %v979
        %981 = vrot.lane.b32.xlu0 %v918, 80
        %v982 = vpop.permute.xlu0 %981
        %v984 = vsel %vm456, %v980, 0
        %v987 = vsel %vm602, %v982, 0
        %989 = vmatprep.subr.bf16.mxu0 0
        %990 = vmatpush1.bf16.msra.mxu0 %v987
        %991 = vmatprep.subr.bf16.mxu0 0
        %992 = vmatpush1.bf16.msra.mxu0 0
        %993 = vmatprep.subr.bf16.mxu0 0
        %994 = vmatpush1.bf16.msra.mxu0 0
        %995 = vmatprep.subr.bf16.mxu0 0
        %996 = vmatpush1.bf16.msra.mxu0 0
        %997 = vmatprep.subr.bf16.mxu0 0
        %998 = vmatpush1.bf16.msra.mxu0 0
        %999 = vmatprep.subr.bf16.mxu0 0
        %1000 = vmatpush1.bf16.msra.mxu0 0
        %1001 = vmatprep.subr.bf16.mxu0 0
        %1002 = vmatpush1.bf16.msra.mxu0 0
        %1003 = vmatprep.subr.bf16.mxu0 0
        %1004 = vmatpush1.bf16.msra.mxu0 0
        %1005 = vmatprep.subr.bf16.mxu0 0
        %1006 = vmatpush1.bf16.msra.mxu0 0
        %1007 = vmatprep.subr.bf16.mxu0 0
        %1008 = vmatpush1.bf16.msra.mxu0 0
        %1009 = vmatprep.subr.bf16.mxu0 0
        %1010 = vmatpush1.bf16.msra.mxu0 0
        %1011 = vmatprep.subr.bf16.mxu0 0
        %1012 = vmatpush1.bf16.msra.mxu0 0
        %1013 = vmatprep.subr.bf16.mxu0 0
        %1014 = vmatpush1.bf16.msra.mxu0 0
        %1015 = vmatprep.subr.bf16.mxu0 0
        %1016 = vmatpush1.bf16.msra.mxu0 0
        %1017 = vmatprep.subr.bf16.mxu0 0
        %1018 = vmatpush1.bf16.msra.mxu0 0
        %1019 = vmatprep.subr.bf16.mxu0 0
        %1020 = vmatpush1.bf16.msra.mxu0 0
        %1021 = vmatprep.mubr.bf16.mxu0 0
        %1022 = vmatmul.mubr.bf16.gmra.mrb[0].mxu0 %v984
        %v1023 = vpop.f32.mrb[0].mxu0
        %v1024 = vadd.f32 0.0, %v1023
        %v1025 = vpop.f32.mrb[0].mxu0
        %v1026 = vpop.f32.mrb[0].mxu0
        %v1027 = vpop.f32.mrb[0].mxu0
        %1028 = vdwg.mxu0
        %v1029 = vpack.c.bf16 %v1024, %v1024
        %v1031 = vunpack.c.l.b16 %v1029
        %v1032 = vpack.c.b16 %v1031, %v1031
        %1033 = vrot.lane.b32.xlu0 %v1032, 16
        %v1034 = vpop.permute.xlu0 %1033
        %vm1036 = vcmask 191616
        %1037 = vst.msk [vmem:[#allocation2] sm:$0xf] %vm1036, %v1034
        %v1038 = vld [vmem:[%s327] sm:$0xf]
        %s1039 = scalar_lea.vmem [#allocation9], 24
        %v1040 = vld [vmem:[%s1039] sm:$0xf]
        %v1041 = vld [vmem:[%s1039 + $0x4] sm:$0xf]
        %1042 = vrot.lane.b32.xlu0 %v440, 104
        %v1043 = vpop.permute.xlu0 %1042
        %v1046 = vunpack.c.l.b16 %v1040
        %v1047 = vunpack.c.l.b16 %v1041
        %v1048 = vpack.c.b16 %v1047, %v1046
        %v1050 = vsel %vm456, %v1043, 0
        %v1053 = vsel %vm456, %v1048, 0
        %1055 = vmatprep.subr.bf16.mxu0 0
        %1056 = vmatpush1.bf16.xpose.msra.mxu0 %v1053
        %1057 = vmatprep.subr.bf16.mxu0 0
        %1058 = vmatpush1.bf16.xpose.msra.mxu0 0
        %1059 = vmatprep.subr.bf16.mxu0 0
        %1060 = vmatpush1.bf16.xpose.msra.mxu0 0
        %1061 = vmatprep.subr.bf16.mxu0 0
        %1062 = vmatpush1.bf16.xpose.msra.mxu0 0
        %1063 = vmatprep.subr.bf16.mxu0 0
        %1064 = vmatpush1.bf16.xpose.msra.mxu0 0
        %1065 = vmatprep.subr.bf16.mxu0 0
        %1066 = vmatpush1.bf16.xpose.msra.mxu0 0
        %1067 = vmatprep.subr.bf16.mxu0 0
        %1068 = vmatpush1.bf16.xpose.msra.mxu0 0
        %1069 = vmatprep.subr.bf16.mxu0 0
        %1070 = vmatpush1.bf16.xpose.msra.mxu0 0
        %1071 = vmatprep.subr.bf16.mxu0 0
        %1072 = vmatpush1.bf16.xpose.msra.mxu0 0
        %1073 = vmatprep.subr.bf16.mxu0 0
        %1074 = vmatpush1.bf16.xpose.msra.mxu0 0
        %1075 = vmatprep.subr.bf16.mxu0 0
        %1076 = vmatpush1.bf16.xpose.msra.mxu0 0
        %1077 = vmatprep.subr.bf16.mxu0 0
        %1078 = vmatpush1.bf16.xpose.msra.mxu0 0
        %1079 = vmatprep.subr.bf16.mxu0 0
        %1080 = vmatpush1.bf16.xpose.msra.mxu0 0
        %1081 = vmatprep.subr.bf16.mxu0 0
        %1082 = vmatpush1.bf16.xpose.msra.mxu0 0
        %1083 = vmatprep.subr.bf16.mxu0 0
        %1084 = vmatpush1.bf16.xpose.msra.mxu0 0
        %1085 = vmatprep.subr.bf16.mxu0 0
        %1086 = vmatpush1.bf16.xpose.msra.mxu0 0
        %1087 = vmatprep.mubr.bf16.mxu0 0
        %1088 = vmatmul.mubr.bf16.gmra.mrb[0].mxu0 %v1050
        %v1089 = vpop.f32.mrb[0].mxu0
        %v1090 = vadd.f32 0.0, %v1089
        %v1091 = vpop.f32.mrb[0].mxu0
        %v1092 = vpop.f32.mrb[0].mxu0
        %v1093 = vpop.f32.mrb[0].mxu0
        %1094 = vdwg.mxu0
        %1096 = vrot.lane.b32.xlu0 %v1090, 4
        %v1097 = vpop.permute.xlu0 %1096
        %v1099 = vsel %vm510, %v1090, %v1097
        %1101 = vrot.lane.b32.xlu0 %v1099, 2
        %v1102 = vpop.permute.xlu0 %1101
        %v1104 = vsel %vm520, %v1099, %v1102
        %1106 = vrot.lane.b32.xlu0 %v1104, 1
        %v1107 = vpop.permute.xlu0 %1106
        %v1109 = vsel %vm528, %v1104, %v1107
        %v1111 = vunpack.c.l.b16 %v1038
        %v1112 = vpack.c.b16 %v1111, %v1111
        %1113 = vrot.lane.b32.xlu0 %v1112, 104
        %v1114 = vpop.permute.xlu0 %1113
        %1116 = vrot.lane.b32.xlu0 %v1109, 121
        %v1117 = vpop.permute.xlu0 %1116
        %v1120 = vsel %vm456, %v1114, 0
        %1122 = vmatprep.subr.bf16.mxu0 0
        %1123 = vmatpush1.bf16.xpose.msra.mxu0 %v1120
        %1124 = vmatprep.subr.bf16.mxu0 0
        %1125 = vmatpush1.bf16.xpose.msra.mxu0 0
        %1126 = vmatprep.subr.bf16.mxu0 0
        %1127 = vmatpush1.bf16.xpose.msra.mxu0 0
        %1128 = vmatprep.subr.bf16.mxu0 0
        %1129 = vmatpush1.bf16.xpose.msra.mxu0 0
        %1130 = vmatprep.subr.bf16.mxu0 0
        %1131 = vmatpush1.bf16.xpose.msra.mxu0 0
        %1132 = vmatprep.subr.bf16.mxu0 0
        %1133 = vmatpush1.bf16.xpose.msra.mxu0 0
        %1134 = vmatprep.subr.bf16.mxu0 0
        %1135 = vmatpush1.bf16.xpose.msra.mxu0 0
        %1136 = vmatprep.subr.bf16.mxu0 0
        %1137 = vmatpush1.bf16.xpose.msra.mxu0 0
        %1138 = vmatprep.subr.bf16.mxu0 0
        %1139 = vmatpush1.bf16.xpose.msra.mxu0 0
        %1140 = vmatprep.subr.bf16.mxu0 0
        %1141 = vmatpush1.bf16.xpose.msra.mxu0 0
        %1142 = vmatprep.subr.bf16.mxu0 0
        %1143 = vmatpush1.bf16.xpose.msra.mxu0 0
        %1144 = vmatprep.subr.bf16.mxu0 0
        %1145 = vmatpush1.bf16.xpose.msra.mxu0 0
        %1146 = vmatprep.subr.bf16.mxu0 0
        %1147 = vmatpush1.bf16.xpose.msra.mxu0 0
        %1148 = vmatprep.subr.bf16.mxu0 0
        %1149 = vmatpush1.bf16.xpose.msra.mxu0 0
        %1150 = vmatprep.subr.bf16.mxu0 0
        %1151 = vmatpush1.bf16.xpose.msra.mxu0 0
        %1152 = vmatprep.subr.bf16.mxu0 0
        %1153 = vmatpush1.bf16.xpose.msra.mxu0 0
        %1154 = vmatprep.mubr.bf16.mxu0 0
        %1155 = vmatmul.mubr.bf16.gmra.mrb[0].mxu0 %v1050
        %v1156 = vpop.f32.mrb[0].mxu0
        %v1157 = vadd.f32 %v1117, %v1156
        %v1158 = vpop.f32.mrb[0].mxu0
        %v1159 = vpop.f32.mrb[0].mxu0
        %v1160 = vpop.f32.mrb[0].mxu0
        %1161 = vdwg.mxu0
        %v1162 = vsel %vm447, %v1157, -1e+30
        %v1163 = vsel %vm456, %v1162, -inf
        %1164 = vmax.xlane.f32.xlu0 %v1163
        %v1165 = vpop.xlane.xlu0 %1164
        %v1166 = vsub.f32 %v1162, %v1165
        %v1167 = vmul.f32 %v1166, 1.442695
        %v1168 = vpow.pop %v1167
        %v1169 = vsel %vm456, %v1168, 0.0
        %1170 = vadd.xlane.f32.xlu0 %v1169
        %v1171 = vpop.xlane.xlu0 %1170
        %v1172 = vrcp.pop %v1171
        %v1173 = vmul.f32 %v1168, %v1172
        %v1174 = vpack.c.bf16 %v1173, %v1173
        %1175 = vrot.lane.b32.xlu0 %v1112, 72
        %v1176 = vpop.permute.xlu0 %1175
        %v1178 = vsel %vm456, %v1174, 0
        %v1181 = vsel %vm602, %v1176, 0
        %1183 = vmatprep.subr.bf16.mxu0 0
        %1184 = vmatpush1.bf16.msra.mxu0 %v1181
        %1185 = vmatprep.subr.bf16.mxu0 0
        %1186 = vmatpush1.bf16.msra.mxu0 0
        %1187 = vmatprep.subr.bf16.mxu0 0
        %1188 = vmatpush1.bf16.msra.mxu0 0
        %1189 = vmatprep.subr.bf16.mxu0 0
        %1190 = vmatpush1.bf16.msra.mxu0 0
        %1191 = vmatprep.subr.bf16.mxu0 0
        %1192 = vmatpush1.bf16.msra.mxu0 0
        %1193 = vmatprep.subr.bf16.mxu0 0
        %1194 = vmatpush1.bf16.msra.mxu0 0
        %1195 = vmatprep.subr.bf16.mxu0 0
        %1196 = vmatpush1.bf16.msra.mxu0 0
        %1197 = vmatprep.subr.bf16.mxu0 0
        %1198 = vmatpush1.bf16.msra.mxu0 0
        %1199 = vmatprep.subr.bf16.mxu0 0
        %1200 = vmatpush1.bf16.msra.mxu0 0
        %1201 = vmatprep.subr.bf16.mxu0 0
        %1202 = vmatpush1.bf16.msra.mxu0 0
        %1203 = vmatprep.subr.bf16.mxu0 0
        %1204 = vmatpush1.bf16.msra.mxu0 0
        %1205 = vmatprep.subr.bf16.mxu0 0
        %1206 = vmatpush1.bf16.msra.mxu0 0
        %1207 = vmatprep.subr.bf16.mxu0 0
        %1208 = vmatpush1.bf16.msra.mxu0 0
        %1209 = vmatprep.subr.bf16.mxu0 0
        %1210 = vmatpush1.bf16.msra.mxu0 0
        %1211 = vmatprep.subr.bf16.mxu0 0
        %1212 = vmatpush1.bf16.msra.mxu0 0
        %1213 = vmatprep.subr.bf16.mxu0 0
        %1214 = vmatpush1.bf16.msra.mxu0 0
        %1215 = vmatprep.mubr.bf16.mxu0 0
        %1216 = vmatmul.mubr.bf16.gmra.mrb[0].mxu0 %v1178
        %v1217 = vpop.f32.mrb[0].mxu0
        %v1218 = vadd.f32 0.0, %v1217
        %v1219 = vpop.f32.mrb[0].mxu0
        %v1220 = vpop.f32.mrb[0].mxu0
        %v1221 = vpop.f32.mrb[0].mxu0
        %1222 = vdwg.mxu0
        %v1223 = vpack.c.bf16 %v1218, %v1218
        %v1225 = vunpack.c.l.b16 %v1223
        %v1226 = vpack.c.b16 %v1225, %v1225
        %1227 = vrot.lane.b32.xlu0 %v1226, 24
        %v1228 = vpop.permute.xlu0 %1227
        %vm1230 = vcmask 257216
        %1231 = vst.msk [vmem:[#allocation2] sm:$0xf] %vm1230, %v1228
        %v1232 = vld [vmem:[#allocation2] sm:$0xf]
        %v1233 = vld [vmem:[#allocation11] sm:$0xf]
        %v1234 = vld [vmem:[#allocation11 + $0x4] sm:$0xf]
        %v1235 = vld [vmem:[#allocation11 + $0x8] sm:$0xf]
        %v1236 = vld [vmem:[#allocation11 + $0xc] sm:$0xf]
        %v1237 = vld [vmem:[#allocation12] sm:$0x1]
        %v1239 = vlaneseq
        %v1240 = vshrl.u32 %v1239, 7
        %v1241 = vsub.s32 0, %v1240
        %v1242 = vrot.slane %v1237, %v1241
        %v1248 = vunpack.c.l.b16 %v1233
        %v1249 = vunpack.c.l.b16 %v1234
        %v1250 = vunpack.c.l.b16 %v1235
        %v1251 = vunpack.c.l.b16 %v1236
        %v1252 = vpack.c.b16 %v1249, %v1248
        %v1253 = vpack.c.b16 %v1251, %v1250
        %v1257 = vsel %vm396, %v1232, 0
        %1259 = vmatprep.subr.bf16.mxu0 0
        %1260 = vmatpush1.bf16.msra.mxu0 %v1252
        %1261 = vmatprep.subr.bf16.mxu0 0
        %1262 = vmatpush1.bf16.msra.mxu0 %v1253
        %1263 = vmatprep.subr.bf16.mxu0 0
        %1264 = vmatpush1.bf16.msra.mxu0 0
        %1265 = vmatprep.subr.bf16.mxu0 0
        %1266 = vmatpush1.bf16.msra.mxu0 0
        %1267 = vmatprep.subr.bf16.mxu0 0
        %1268 = vmatpush1.bf16.msra.mxu0 0
        %1269 = vmatprep.subr.bf16.mxu0 0
        %1270 = vmatpush1.bf16.msra.mxu0 0
        %1271 = vmatprep.subr.bf16.mxu0 0
        %1272 = vmatpush1.bf16.msra.mxu0 0
        %1273 = vmatprep.subr.bf16.mxu0 0
        %1274 = vmatpush1.bf16.msra.mxu0 0
        %1275 = vmatprep.subr.bf16.mxu0 0
        %1276 = vmatpush1.bf16.msra.mxu0 0
        %1277 = vmatprep.subr.bf16.mxu0 0
        %1278 = vmatpush1.bf16.msra.mxu0 0
        %1279 = vmatprep.subr.bf16.mxu0 0
        %1280 = vmatpush1.bf16.msra.mxu0 0
        %1281 = vmatprep.subr.bf16.mxu0 0
        %1282 = vmatpush1.bf16.msra.mxu0 0
        %1283 = vmatprep.subr.bf16.mxu0 0
        %1284 = vmatpush1.bf16.msra.mxu0 0
        %1285 = vmatprep.subr.bf16.mxu0 0
        %1286 = vmatpush1.bf16.msra.mxu0 0
        %1287 = vmatprep.subr.bf16.mxu0 0
        %1288 = vmatpush1.bf16.msra.mxu0 0
        %1289 = vmatprep.subr.bf16.mxu0 0
        %1290 = vmatpush1.bf16.msra.mxu0 0
        %1291 = vmatprep.mubr.bf16.mxu0 0
        %1292 = vmatmul.mubr.bf16.gmra.mrb[0].mxu0 %v1257
        %v1293 = vpop.f32.mrb[0].mxu0
        %v1294 = vadd.f32 %v1242, %v1293
        %v1295 = vpop.f32.mrb[0].mxu0
        %v1296 = vpop.f32.mrb[0].mxu0
        %v1297 = vpop.f32.mrb[0].mxu0
        %1298 = vdwg.mxu0
        %1299 = vst.msk [vmem:[%s376] sm:$0xff] %vm396, %v1294
        %s1300 = sand.u32 %s188, 1
        %s1301 = scalar_lea.sflag [#allocation5], %s1300
        %s1302 = sand.u32 %s188, 1
        %s1303 = smul.addr %s1302, 8
        %s1304 = scalar_lea.vmem [#allocation14], %s1303
        // Predicated region
        $region69: #{multi_head_relative_attention.1} parent=43 // pred_check
          %p1305 = pneg %p198
        $region70: #{multi_head_relative_attention.1} parent=43 // pred_check_branch
          %1307 = sbr.rel (%p1305) target = $region72
        $region71: #{multi_head_relative_attention.1} parent=43 // pred_region
          %s1309 = ssub.s32 128, 128
          %1310 = vsyncadd %s1301, %s1309
          %s1311 = sadd.s32 %s33, %s32
          %s1312 = smul.addr %s1311, 128
          %s1313 = scalar_lea.hbm %s6, %s1312
          %s1315 = sshll.u32 %s1304, 4
          %s1316 = int_to_ptr.vmem [resolvable:$true] %s1315
          %1318 = dma.vmem_to_hbm [thread:$0]  %s1316, 128, %s1313, %s1301
        $region72: #{multi_head_relative_attention.1} parent=43 // pred_fallthru
          _
      $region44: #{multi_head_relative_attention.1} parent=5 // pred_fallthru
        _
      %p1319 = scmp.le.s32.totalorder 2, %s23
      // Predicated region
      $region73: #{multi_head_relative_attention.1} parent=5 // pred_check
        %p1320 = pneg %p1319
      $region74: #{multi_head_relative_attention.1} parent=5 // pred_check_branch
        %1322 = sbr.rel (%p1320) target = $region76
      $region75: #{multi_head_relative_attention.1} parent=5 // pred_region
        %s1323 = ssub.s32 %s23, 2
        // Predicated region
        $region77: #{multi_head_relative_attention.1} parent=75 // pred_check
          %p1324 = pneg %p204
        $region78: #{multi_head_relative_attention.1} parent=75 // pred_check_branch
          %1326 = sbr.rel (%p1324) target = $region80
        $region79: #{multi_head_relative_attention.1} parent=75 // pred_region
          %s1327 = sand.u32 %s189, 1
          %s1328 = scalar_lea.sflag [#allocation5], %s1327
          %s1329 = sand.u32 %s189, 1
          %s1330 = smul.addr %s1329, 8
          %s1331 = scalar_lea.vmem [#allocation14], %s1330
          %1332 = dma.done %s1328, 128
        $region80: #{multi_head_relative_attention.1} parent=75 // pred_fallthru
          _
      $region76: #{multi_head_relative_attention.1} parent=5 // pred_fallthru
        _
    $region6: #{multi_head_relative_attention.1} parent=1 // loop_footer
      %s27 = sadd.s32 1, %s23
    $region7: #{multi_head_relative_attention.1} parent=1 // loop_footer_branch
      %22 = sbr.rel target = $region3
    $region8: #{multi_head_relative_attention.1} parent=1 // loop_exit
      _
    %1333 = vsyncpa [#allocation4], 1
    %s1334 = scalar_lea.sflag [#allocation4], 1
    %1335 = vsyncpa %s1334, 1
    %1336 = vsyncpa [#allocation7], 1
    %s1337 = scalar_lea.sflag [#allocation7], 1
    %1338 = vsyncpa %s1337, 1
    %1339 = vsyncpa [#allocation10], 1
    %1340 = vsyncpa [#allocation13], 1
    %1341 = vsyncpa [#allocation5], 1
    %s1342 = scalar_lea.sflag [#allocation5], 1
    %1343 = vsyncpa %s1342, 1

</llo_original>
